<compile_context>
chip_gen: v5e
topology: v5e:2x2
jax: 0.10.0
libtpu: 0.0.40
codegen_flags: <defaults>
</compile_context>

<pallas_src>
import math

import jax
import jax.numpy as jnp
from jax.experimental import pallas as pl
from jax.experimental.pallas import tpu as pltpu

# ----------------------------- model sizes ---------------------------------
B = 2          # number of graphs in the batch
N_MAX = 16     # max nodes per graph after densification
F_IN = 4       # input node features (PROTEINS w/ node attrs ~ 4)
MP_CH = 32     # mp_channels
K1 = 8         # clusters of pool1
K2 = 4         # clusters of pool2
N_OUT = 2      # dataset.num_classes for PROTEINS


# ------------------------- in-kernel building blocks -------------------------
def _mp_core(a, xw, xwr, bias, mask):
    """relu(A @ (X@W) + X@Wr + b) [* mask], given the pre-applied weights."""
    h = jnp.dot(a, xw, preferred_element_type=jnp.float32) + xwr + bias
    h = jnp.maximum(h, 0.0)
    if mask is not None:
        h = h * mask
    return h


def _mp(a, x, wcat, bias, mask):
    """Dense GraphConv with W/Wr fused into one matmul (wcat = [W | Wr])."""
    fout = wcat.shape[1] // 2
    xwc = jnp.dot(x, wcat, preferred_element_type=jnp.float32)   # [n, 2*fout]
    return _mp_core(a, xwc[:, :fout], xwc[:, fout:], bias, mask)


def _pool(x, a, mask, ws, bs):
    """Dense pooling: S = softmax(X Ws + bs)[*mask]; X'=S^T X; A'=S^T A S;
    tv = 1 - tr(S^T A S)/tr(S^T D S); bal = ||S^T S/||S^T S||_F - I/sqrt(K)||_F."""
    k = ws.shape[-1]
    logits = jnp.dot(x, ws, preferred_element_type=jnp.float32) + bs     # [n, k]
    logits = logits - jnp.max(logits, axis=-1, keepdims=True)
    e = jnp.exp(logits)
    s = e / jnp.sum(e, axis=-1, keepdims=True)
    if mask is not None:
        s = s * mask                                                     # zero padded nodes

    # contract over the node axis (avoids explicit transposes)
    dn = (((0,), (0,)), ((), ()))
    xp = jax.lax.dot_general(s, x, dn, preferred_element_type=jnp.float32)  # [k, f]
    sa = jax.lax.dot_general(s, a, dn, preferred_element_type=jnp.float32)  # [k, n]
    ap = jnp.dot(sa, s, preferred_element_type=jnp.float32)                 # [k, k]
    ss = jax.lax.dot_general(s, s, dn, preferred_element_type=jnp.float32)  # [k, k]

    ii = jax.lax.broadcasted_iota(jnp.int32, (k, k), 0)
    jj = jax.lax.broadcasted_iota(jnp.int32, (k, k), 1)
    eye = (ii == jj).astype(jnp.float32)

    deg = jnp.sum(a, axis=-1, keepdims=True)                             # [n, 1]
    num = jnp.sum(ap * eye)                                              # tr(S^T A S)
    den = jnp.sum(deg * s * s)                                           # tr(S^T D S)
    tv = 1.0 - num / (den + 1e-9)

    ss_fro = jnp.sqrt(jnp.sum(ss * ss) + 1e-9)
    bal = jnp.sqrt(jnp.sum((ss / ss_fro - eye / math.sqrt(float(k))) ** 2) + 1e-9)
    return xp, ap, tv, bal


# ----------------------------- fused kernel ----------------------------------
def _fused_kernel(cnt_ref, x_ref, adj_ref,
                  w1_ref, b1_ref, ws1_ref, bs1_ref,
                  w2_ref, b2_ref, ws2_ref, bs2_ref,
                  w3_ref, b3_ref, wo_ref, bo_ref,
                  logits_ref, tv_ref, bal_ref):
    n_graphs, n_max, _ = adj_ref.shape
    mp_ch = w1_ref.shape[1] // 2
    k2 = ws2_ref.shape[1]

    # Weights: loaded once, VMEM/vreg resident for all graphs & layers.
    w1, b1 = w1_ref[...], b1_ref[...]
    ws1, bs1 = ws1_ref[...], bs1_ref[...]
    w2, b2 = w2_ref[...], b2_ref[...]
    ws2, bs2 = ws2_ref[...], bs2_ref[...]
    w3, b3 = w3_ref[...], b3_ref[...]
    wo, bo = wo_ref[...], bo_ref[...]

    # mp1 feature transform amortized over the whole batch:
    # one [B*N, F_IN] x [F_IN, 2*MP_CH] matmul instead of two per graph.
    xwc1_all = jnp.dot(x_ref[...], w1, preferred_element_type=jnp.float32)

    # Constants hoisted out of the per-graph loop.
    mean_row = jnp.full((1, k2), 1.0 / k2, dtype=jnp.float32)   # mean -> MXU dot
    row_ids = jax.lax.broadcasted_iota(jnp.int32, (n_max, 1), 0)

    tv_acc = 0.0
    bal_acc = 0.0
    for g in range(n_graphs):        # B is tiny & static -> fully unrolled
        a0 = adj_ref[g]                                           # [N, N]
        # node-validity mask built in-kernel from the SMEM count table
        mask = (row_ids < cnt_ref[g]).astype(jnp.float32)         # [N, 1]

        # mp1 (pre-applied X@[W|Wr] sliced from the batched matmul above)
        xwc = xwc1_all[g * n_max:(g + 1) * n_max]
        h = _mp_core(a0, xwc[:, :mp_ch], xwc[:, mp_ch:], b1, mask)

        # pool1
        h, a1, tv1, bal1 = _pool(h, a0, mask, ws1, bs1)
        # mp2 (pooled graph: every node valid -> mask-free path)
        h = _mp(a1, h, w2, b2, None)
        # pool2
        h, a2, tv2, bal2 = _pool(h, a1, None, ws2, bs2)
        # mp3
        h = _mp(a2, h, w3, b3, None)

        # head: mean over clusters (as a dot) + output Linear
        pooled = jnp.dot(mean_row, h, preferred_element_type=jnp.float32)  # [1, MP_CH]
        row = jnp.dot(pooled, wo, preferred_element_type=jnp.float32) + bo # [1, N_OUT]
        logits_ref[g:g + 1, :] = row.astype(logits_ref.dtype)

        tv_acc = tv_acc + tv1 + tv2
        bal_acc = bal_acc + bal1 + bal2

    inv = 1.0 / n_graphs
    tv_ref[...] = jnp.reshape(tv_acc * inv, (1, 1))
    bal_ref[...] = jnp.reshape(bal_acc * inv, (1, 1))


def fused_forward(counts, x_flat, adj, params):
    # Fuse W / W_root into a single weight per MP layer (outside the kernel).
    w1 = jnp.concatenate([params["mp1_w"], params["mp1_wr"]], axis=1)
    w2 = jnp.concatenate([params["mp2_w"], params["mp2_wr"]], axis=1)
    w3 = jnp.concatenate([params["mp3_w"], params["mp3_wr"]], axis=1)

    smem = pl.BlockSpec(memory_space=pltpu.MemorySpace.SMEM)
    vmem = pl.BlockSpec(memory_space=pltpu.MemorySpace.VMEM)

    logits, tv, bal = pl.pallas_call(
        _fused_kernel,
        out_shape=(
            jax.ShapeDtypeStruct((adj.shape[0], N_OUT), jnp.float32),
            jax.ShapeDtypeStruct((1, 1), jnp.float32),
            jax.ShapeDtypeStruct((1, 1), jnp.float32),
        ),
        in_specs=[smem] + [vmem] * 14,
        out_specs=(vmem, vmem, vmem),
    )(counts, x_flat, adj,
      w1, params["mp1_b"], params["pool1_ws"], params["pool1_bs"],
      w2, params["mp2_b"], params["pool2_ws"], params["pool2_bs"],
      w3, params["mp3_b"], params["out_w"], params["out_b"])
    return logits, tv[0, 0], bal[0, 0]


# ----------------------------- glue (plain JAX) ------------------------------
# TODO(synk): densification (to_dense_batch/to_dense_adj) stays in plain JAX
# (XLA scatters, off the hot path); move edge lists into the kernel via scalar
# prefetch only if edge counts grow.
def to_dense(x, edge_index, edge_weight, batch, num_graphs, max_nodes):
    total = x.shape[0]
    counts = jnp.zeros((num_graphs,), jnp.int32).at[batch].add(1)
    starts = jnp.concatenate([jnp.zeros((1,), jnp.int32), jnp.cumsum(counts)[:-1]])
    pos = jnp.arange(total, dtype=jnp.int32) - starts[batch]

    x_dense = jnp.zeros((num_graphs, max_nodes, x.shape[1]), jnp.float32)
    x_dense = x_dense.at[batch, pos].set(x)

    src, dst = edge_index[0], edge_index[1]
    adj = jnp.zeros((num_graphs, max_nodes, max_nodes), jnp.float32)
    adj = adj.at[batch[src], pos[src], pos[dst]].add(edge_weight)

    x_flat = x_dense.reshape(num_graphs * max_nodes, x.shape[1])
    return x_flat, adj, counts


def classification_forward(params, x, edge_index, edge_weight, batch):
    x_flat, adj, counts = to_dense(x, edge_index, edge_weight, batch, B, N_MAX)
    return fused_forward(counts, x_flat, adj, params)


# ----------------------------- params & inputs -------------------------------
def glorot(key, shape):
    lim = math.sqrt(6.0 / (shape[0] + shape[1]))
    return jax.random.uniform(key, shape, jnp.float32, -lim, lim)


def make_params(key):
    ks = jax.random.split(key, 16)
    return {
        "mp1_w": glorot(ks[0], (F_IN, MP_CH)),
        "mp1_wr": glorot(ks[1], (F_IN, MP_CH)),
        "mp1_b": jnp.zeros((1, MP_CH), jnp.float32),
        "pool1_ws": glorot(ks[2], (MP_CH, K1)),
        "pool1_bs": jnp.zeros((1, K1), jnp.float32),
        "mp2_w": glorot(ks[3], (MP_CH, MP_CH)),
        "mp2_wr": glorot(ks[4], (MP_CH, MP_CH)),
        "mp2_b": jnp.zeros((1, MP_CH), jnp.float32),
        "pool2_ws": glorot(ks[5], (MP_CH, K2)),
        "pool2_bs": jnp.zeros((1, K2), jnp.float32),
        "mp3_w": glorot(ks[6], (MP_CH, MP_CH)),
        "mp3_wr": glorot(ks[7], (MP_CH, MP_CH)),
        "mp3_b": jnp.zeros((1, MP_CH), jnp.float32),
        "out_w": glorot(ks[8], (MP_CH, N_OUT)),
        "out_b": jnp.zeros((1, N_OUT), jnp.float32),
    }


def make_inputs(key):
    n0, n1 = 16, 12                      # graph sizes (n1 < N_MAX -> padding)
    e0, e1 = 32, 24
    ks = jax.random.split(key, 8)
    x = jax.random.normal(ks[0], (n0 + n1, F_IN), jnp.float32)
    batch = jnp.concatenate([jnp.zeros((n0,), jnp.int32), jnp.ones((n1,), jnp.int32)])

    src0 = jax.random.randint(ks[1], (e0,), 0, n0)
    dst0 = jax.random.randint(ks[2], (e0,), 0, n0)
    src1 = jax.random.randint(ks[3], (e1,), 0, n1) + n0
    dst1 = jax.random.randint(ks[4], (e1,), 0, n1) + n0
    # symmetric (undirected) edges with matching weights
    src = jnp.concatenate([src0, dst0, src1, dst1]).astype(jnp.int32)
    dst = jnp.concatenate([dst0, src0, dst1, src1]).astype(jnp.int32)
    ew0 = jax.random.uniform(ks[5], (e0,), jnp.float32, 0.1, 1.0)
    ew1 = jax.random.uniform(ks[6], (e1,), jnp.float32, 0.1, 1.0)
    edge_weight = jnp.concatenate([ew0, ew0, ew1, ew1])
    edge_index = jnp.stack([src, dst])
    return x, edge_index, edge_weight, batch


# ----------------------------- main -------------------------------------------
if __name__ == "__main__":
    key = jax.random.PRNGKey(0)
    kp, kx = jax.random.split(key)
    params = make_params(kp)
    x, edge_index, edge_weight, batch = make_inputs(kx)

    fwd = jax.jit(classification_forward)
    logits, tv, bal = fwd(params, x, edge_index, edge_weight, batch)
    jax.block_until_ready((logits, tv, bal))

    assert logits.shape == (B, N_OUT)
    assert tv.shape == () and bal.shape == ()
    print("KERNEL_OK")
</pallas_src>

<mosaic_0001>
module attributes {stable_mosaic.version = 11 : i64} {
  func.func @_fused_kernel(%arg0: memref<2xi32, #tpu.memory_space<smem>>, %arg1: memref<32x4xf32, #tpu.memory_space<vmem>>, %arg2: memref<2x16x16xf32, #tpu.memory_space<vmem>>, %arg3: memref<4x64xf32, #tpu.memory_space<vmem>>, %arg4: memref<1x32xf32, #tpu.memory_space<vmem>>, %arg5: memref<32x8xf32, #tpu.memory_space<vmem>>, %arg6: memref<1x8xf32, #tpu.memory_space<vmem>>, %arg7: memref<32x64xf32, #tpu.memory_space<vmem>>, %arg8: memref<1x32xf32, #tpu.memory_space<vmem>>, %arg9: memref<32x4xf32, #tpu.memory_space<vmem>>, %arg10: memref<1x4xf32, #tpu.memory_space<vmem>>, %arg11: memref<32x64xf32, #tpu.memory_space<vmem>>, %arg12: memref<1x32xf32, #tpu.memory_space<vmem>>, %arg13: memref<32x2xf32, #tpu.memory_space<vmem>>, %arg14: memref<1x2xf32, #tpu.memory_space<vmem>>, %arg15: memref<2x2xf32, #tpu.memory_space<vmem>>, %arg16: memref<1x1xf32, #tpu.memory_space<vmem>>, %arg17: memref<1x1xf32, #tpu.memory_space<vmem>>) attributes {dimension_semantics = [], scalar_prefetch = 0 : i64, scratch_operands = 0 : i64, tpu.core_type = #tpu.core_type<tc>} {
    %c0 = arith.constant 0 : index
    %c0_0 = arith.constant 0 : index
    %0 = vector.load %arg3[%c0, %c0_0] : memref<4x64xf32, #tpu.memory_space<vmem>>, vector<4x64xf32>
    %c0_1 = arith.constant 0 : index
    %c0_2 = arith.constant 0 : index
    %1 = vector.load %arg4[%c0_1, %c0_2] : memref<1x32xf32, #tpu.memory_space<vmem>>, vector<1x32xf32>
    %c0_3 = arith.constant 0 : index
    %c0_4 = arith.constant 0 : index
    %2 = vector.load %arg5[%c0_3, %c0_4] : memref<32x8xf32, #tpu.memory_space<vmem>>, vector<32x8xf32>
    %c0_5 = arith.constant 0 : index
    %c0_6 = arith.constant 0 : index
    %3 = vector.load %arg6[%c0_5, %c0_6] : memref<1x8xf32, #tpu.memory_space<vmem>>, vector<1x8xf32>
    %c0_7 = arith.constant 0 : index
    %c0_8 = arith.constant 0 : index
    %4 = vector.load %arg7[%c0_7, %c0_8] : memref<32x64xf32, #tpu.memory_space<vmem>>, vector<32x64xf32>
    %c0_9 = arith.constant 0 : index
    %c0_10 = arith.constant 0 : index
    %5 = vector.load %arg8[%c0_9, %c0_10] : memref<1x32xf32, #tpu.memory_space<vmem>>, vector<1x32xf32>
    %c0_11 = arith.constant 0 : index
    %c0_12 = arith.constant 0 : index
    %6 = vector.load %arg9[%c0_11, %c0_12] : memref<32x4xf32, #tpu.memory_space<vmem>>, vector<32x4xf32>
    %c0_13 = arith.constant 0 : index
    %c0_14 = arith.constant 0 : index
    %7 = vector.load %arg10[%c0_13, %c0_14] : memref<1x4xf32, #tpu.memory_space<vmem>>, vector<1x4xf32>
    %c0_15 = arith.constant 0 : index
    %c0_16 = arith.constant 0 : index
    %8 = vector.load %arg11[%c0_15, %c0_16] : memref<32x64xf32, #tpu.memory_space<vmem>>, vector<32x64xf32>
    %c0_17 = arith.constant 0 : index
    %c0_18 = arith.constant 0 : index
    %9 = vector.load %arg12[%c0_17, %c0_18] : memref<1x32xf32, #tpu.memory_space<vmem>>, vector<1x32xf32>
    %c0_19 = arith.constant 0 : index
    %c0_20 = arith.constant 0 : index
    %10 = vector.load %arg13[%c0_19, %c0_20] : memref<32x2xf32, #tpu.memory_space<vmem>>, vector<32x2xf32>
    %c0_21 = arith.constant 0 : index
    %c0_22 = arith.constant 0 : index
    %11 = vector.load %arg14[%c0_21, %c0_22] : memref<1x2xf32, #tpu.memory_space<vmem>>, vector<1x2xf32>
    %c0_23 = arith.constant 0 : index
    %c0_24 = arith.constant 0 : index
    %12 = vector.load %arg1[%c0_23, %c0_24] : memref<32x4xf32, #tpu.memory_space<vmem>>, vector<32x4xf32>
    %cst = arith.constant dense<0.000000e+00> : vector<32x64xf32>
    %13 = tpu.matmul %12, %0, %cst {dimension_numbers = #tpu.dot_dimension_numbers<[1], [0], [0], [1], [0, 0, 1, 1], [], []>} : vector<32x4xf32>, vector<4x64xf32>, vector<32x64xf32> -> vector<32x64xf32>
    %cst_25 = arith.constant 2.500000e-01 : f32
    %14 = vector.broadcast %cst_25 : f32 to vector<1x4xf32>
    %15 = tpu.iota {dimensions = array<i32: 0>} : vector<16x1xi32>
    %c0_26 = arith.constant 0 : index
    %c0_27 = arith.constant 0 : index
    %c0_28 = arith.constant 0 : index
    %16 = vector.load %arg2[%c0_26, %c0_27, %c0_28] : memref<2x16x16xf32, #tpu.memory_space<vmem>>, vector<1x16x16xf32>
    %17 = vector.shape_cast %16 : vector<1x16x16xf32> to vector<16x16xf32>
    %c0_29 = arith.constant 0 : index
    %18 = memref.load %arg0[%c0_29] : memref<2xi32, #tpu.memory_space<smem>>
    %19 = vector.broadcast %18 : i32 to vector<16x1xi32>
    %20 = arith.cmpi slt, %15, %19 : vector<16x1xi32>
    %21 = arith.extui %20 : vector<16x1xi1> to vector<16x1xi32>
    %22 = arith.sitofp %21 : vector<16x1xi32> to vector<16x1xf32>
    %23 = vector.extract_strided_slice %13 {offsets = [0, 0], sizes = [16, 64], strides = [1, 1]} : vector<32x64xf32> to vector<16x64xf32>
    %24 = vector.extract_strided_slice %23 {offsets = [0, 0], sizes = [16, 32], strides = [1, 1]} : vector<16x64xf32> to vector<16x32xf32>
    %25 = vector.extract_strided_slice %23 {offsets = [0, 32], sizes = [16, 32], strides = [1, 1]} : vector<16x64xf32> to vector<16x32xf32>
    %cst_30 = arith.constant dense<0.000000e+00> : vector<16x32xf32>
    %26 = tpu.matmul %17, %24, %cst_30 {dimension_numbers = #tpu.dot_dimension_numbers<[1], [0], [0], [1], [0, 0, 1, 1], [], []>} : vector<16x16xf32>, vector<16x32xf32>, vector<16x32xf32> -> vector<16x32xf32>
    %27 = arith.addf %26, %25 : vector<16x32xf32>
    %28 = vector.broadcast %1 : vector<1x32xf32> to vector<16x32xf32>
    %29 = arith.addf %27, %28 : vector<16x32xf32>
    %cst_31 = arith.constant 0.000000e+00 : f32
    %30 = vector.broadcast %cst_31 : f32 to vector<16x32xf32>
    %31 = arith.maximumf %29, %30 : vector<16x32xf32>
    %32 = vector.broadcast %22 : vector<16x1xf32> to vector<16x32xf32>
    %33 = arith.mulf %31, %32 : vector<16x32xf32>
    %cst_32 = arith.constant dense<0.000000e+00> : vector<16x8xf32>
    %34 = tpu.matmul %33, %2, %cst_32 {dimension_numbers = #tpu.dot_dimension_numbers<[1], [0], [0], [1], [0, 0, 1, 1], [], []>} : vector<16x32xf32>, vector<32x8xf32>, vector<16x8xf32> -> vector<16x8xf32>
    %35 = vector.broadcast %3 : vector<1x8xf32> to vector<16x8xf32>
    %36 = arith.addf %34, %35 : vector<16x8xf32>
    %cst_33 = arith.constant dense<0xFF800000> : vector<16xf32>
    %37 = vector.multi_reduction <maximumf>, %36, %cst_33 [1] : vector<16x8xf32> to vector<16xf32>
    %38 = vector.shape_cast %37 : vector<16xf32> to vector<16x1xf32>
    %39 = vector.broadcast %38 : vector<16x1xf32> to vector<16x8xf32>
    %40 = arith.subf %36, %39 : vector<16x8xf32>
    %41 = math.exp %40 : vector<16x8xf32>
    %cst_34 = arith.constant dense<0.000000e+00> : vector<16xf32>
    %42 = vector.multi_reduction <add>, %41, %cst_34 [1] : vector<16x8xf32> to vector<16xf32>
    %43 = vector.shape_cast %42 : vector<16xf32> to vector<16x1xf32>
    %44 = vector.broadcast %43 : vector<16x1xf32> to vector<16x8xf32>
    %45 = arith.divf %41, %44 : vector<16x8xf32>
    %46 = vector.broadcast %22 : vector<16x1xf32> to vector<16x8xf32>
    %47 = arith.mulf %45, %46 : vector<16x8xf32>
    %cst_35 = arith.constant dense<0.000000e+00> : vector<8x32xf32>
    %48 = tpu.matmul %47, %33, %cst_35 {dimension_numbers = #tpu.dot_dimension_numbers<[0], [0], [1], [1], [0, 1, 1, 1], [], []>} : vector<16x8xf32>, vector<16x32xf32>, vector<8x32xf32> -> vector<8x32xf32>
    %cst_36 = arith.constant dense<0.000000e+00> : vector<8x16xf32>
    %49 = tpu.matmul %47, %17, %cst_36 {dimension_numbers = #tpu.dot_dimension_numbers<[0], [0], [1], [1], [0, 1, 1, 1], [], []>} : vector<16x8xf32>, vector<16x16xf32>, vector<8x16xf32> -> vector<8x16xf32>
    %cst_37 = arith.constant dense<0.000000e+00> : vector<8x8xf32>
    %50 = tpu.matmul %49, %47, %cst_37 {dimension_numbers = #tpu.dot_dimension_numbers<[1], [0], [0], [1], [0, 0, 1, 1], [], []>} : vector<8x16xf32>, vector<16x8xf32>, vector<8x8xf32> -> vector<8x8xf32>
    %cst_38 = arith.constant dense<0.000000e+00> : vector<8x8xf32>
    %51 = tpu.matmul %47, %47, %cst_38 {dimension_numbers = #tpu.dot_dimension_numbers<[0], [0], [1], [1], [0, 1, 1, 1], [], []>} : vector<16x8xf32>, vector<16x8xf32>, vector<8x8xf32> -> vector<8x8xf32>
    %52 = tpu.iota {dimensions = array<i32: 0>} : vector<8x8xi32>
    %53 = tpu.iota {dimensions = array<i32: 1>} : vector<8x8xi32>
    %54 = arith.cmpi eq, %52, %53 : vector<8x8xi32>
    %55 = arith.extui %54 : vector<8x8xi1> to vector<8x8xi32>
    %56 = arith.sitofp %55 : vector<8x8xi32> to vector<8x8xf32>
    %cst_39 = arith.constant dense<0.000000e+00> : vector<16xf32>
    %57 = vector.multi_reduction <add>, %17, %cst_39 [1] : vector<16x16xf32> to vector<16xf32>
    %58 = vector.shape_cast %57 : vector<16xf32> to vector<16x1xf32>
    %59 = arith.mulf %50, %56 : vector<8x8xf32>
    %60 = vector.shape_cast %59 : vector<8x8xf32> to vector<1x8x8xf32>
    %cst_40 = arith.constant dense<0.000000e+00> : vector<1xf32>
    %61 = vector.multi_reduction <add>, %60, %cst_40 [1, 2] : vector<1x8x8xf32> to vector<1xf32>
    %62 = vector.shape_cast %61 : vector<1xf32> to vector<1x1x1xf32>
    %63 = vector.extract %62[0, 0, 0] : f32 from vector<1x1x1xf32>
    %64 = vector.broadcast %58 : vector<16x1xf32> to vector<16x8xf32>
    %65 = arith.mulf %64, %47 : vector<16x8xf32>
    %66 = arith.mulf %65, %47 : vector<16x8xf32>
    %67 = vector.shape_cast %66 : vector<16x8xf32> to vector<1x16x8xf32>
    %cst_41 = arith.constant dense<0.000000e+00> : vector<1xf32>
    %68 = vector.multi_reduction <add>, %67, %cst_41 [1, 2] : vector<1x16x8xf32> to vector<1xf32>
    %69 = vector.shape_cast %68 : vector<1xf32> to vector<1x1x1xf32>
    %70 = vector.extract %69[0, 0, 0] : f32 from vector<1x1x1xf32>
    %cst_42 = arith.constant 9.99999971E-10 : f32
    %71 = arith.addf %70, %cst_42 : f32
    %72 = arith.divf %63, %71 : f32
    %cst_43 = arith.constant 1.000000e+00 : f32
    %73 = arith.subf %cst_43, %72 : f32
    %74 = arith.mulf %51, %51 : vector<8x8xf32>
    %75 = vector.shape_cast %74 : vector<8x8xf32> to vector<1x8x8xf32>
    %cst_44 = arith.constant dense<0.000000e+00> : vector<1xf32>
    %76 = vector.multi_reduction <add>, %75, %cst_44 [1, 2] : vector<1x8x8xf32> to vector<1xf32>
    %77 = vector.shape_cast %76 : vector<1xf32> to vector<1x1x1xf32>
    %78 = vector.extract %77[0, 0, 0] : f32 from vector<1x1x1xf32>
    %cst_45 = arith.constant 9.99999971E-10 : f32
    %79 = arith.addf %78, %cst_45 : f32
    %80 = math.sqrt %79 : f32
    %81 = vector.broadcast %80 : f32 to vector<8x8xf32>
    %82 = arith.divf %51, %81 : vector<8x8xf32>
    %cst_46 = arith.constant 2.82842708 : f32
    %83 = vector.broadcast %cst_46 : f32 to vector<8x8xf32>
    %84 = arith.divf %56, %83 : vector<8x8xf32>
    %85 = arith.subf %82, %84 : vector<8x8xf32>
    %86 = arith.mulf %85, %85 : vector<8x8xf32>
    %87 = vector.shape_cast %86 : vector<8x8xf32> to vector<1x8x8xf32>
    %cst_47 = arith.constant dense<0.000000e+00> : vector<1xf32>
    %88 = vector.multi_reduction <add>, %87, %cst_47 [1, 2] : vector<1x8x8xf32> to vector<1xf32>
    %89 = vector.shape_cast %88 : vector<1xf32> to vector<1x1x1xf32>
    %90 = vector.extract %89[0, 0, 0] : f32 from vector<1x1x1xf32>
    %cst_48 = arith.constant 9.99999971E-10 : f32
    %91 = arith.addf %90, %cst_48 : f32
    %92 = math.sqrt %91 : f32
    %cst_49 = arith.constant dense<0.000000e+00> : vector<8x64xf32>
    %93 = tpu.matmul %48, %4, %cst_49 {dimension_numbers = #tpu.dot_dimension_numbers<[1], [0], [0], [1], [0, 0, 1, 1], [], []>} : vector<8x32xf32>, vector<32x64xf32>, vector<8x64xf32> -> vector<8x64xf32>
    %94 = vector.extract_strided_slice %93 {offsets = [0, 0], sizes = [8, 32], strides = [1, 1]} : vector<8x64xf32> to vector<8x32xf32>
    %95 = vector.extract_strided_slice %93 {offsets = [0, 32], sizes = [8, 32], strides = [1, 1]} : vector<8x64xf32> to vector<8x32xf32>
    %cst_50 = arith.constant dense<0.000000e+00> : vector<8x32xf32>
    %96 = tpu.matmul %50, %94, %cst_50 {dimension_numbers = #tpu.dot_dimension_numbers<[1], [0], [0], [1], [0, 0, 1, 1], [], []>} : vector<8x8xf32>, vector<8x32xf32>, vector<8x32xf32> -> vector<8x32xf32>
    %97 = arith.addf %96, %95 : vector<8x32xf32>
    %98 = vector.broadcast %5 : vector<1x32xf32> to vector<8x32xf32>
    %99 = arith.addf %97, %98 : vector<8x32xf32>
    %cst_51 = arith.constant 0.000000e+00 : f32
    %100 = vector.broadcast %cst_51 : f32 to vector<8x32xf32>
    %101 = arith.maximumf %99, %100 : vector<8x32xf32>
    %cst_52 = arith.constant dense<0.000000e+00> : vector<8x4xf32>
    %102 = tpu.matmul %101, %6, %cst_52 {dimension_numbers = #tpu.dot_dimension_numbers<[1], [0], [0], [1], [0, 0, 1, 1], [], []>} : vector<8x32xf32>, vector<32x4xf32>, vector<8x4xf32> -> vector<8x4xf32>
    %103 = vector.broadcast %7 : vector<1x4xf32> to vector<8x4xf32>
    %104 = arith.addf %102, %103 : vector<8x4xf32>
    %cst_53 = arith.constant dense<0xFF800000> : vector<8xf32>
    %105 = vector.multi_reduction <maximumf>, %104, %cst_53 [1] : vector<8x4xf32> to vector<8xf32>
    %106 = vector.shape_cast %105 : vector<8xf32> to vector<8x1xf32>
    %107 = vector.broadcast %106 : vector<8x1xf32> to vector<8x4xf32>
    %108 = arith.subf %104, %107 : vector<8x4xf32>
    %109 = math.exp %108 : vector<8x4xf32>
    %cst_54 = arith.constant dense<0.000000e+00> : vector<8xf32>
    %110 = vector.multi_reduction <add>, %109, %cst_54 [1] : vector<8x4xf32> to vector<8xf32>
    %111 = vector.shape_cast %110 : vector<8xf32> to vector<8x1xf32>
    %112 = vector.broadcast %111 : vector<8x1xf32> to vector<8x4xf32>
    %113 = arith.divf %109, %112 : vector<8x4xf32>
    %cst_55 = arith.constant dense<0.000000e+00> : vector<4x32xf32>
    %114 = tpu.matmul %113, %101, %cst_55 {dimension_numbers = #tpu.dot_dimension_numbers<[0], [0], [1], [1], [0, 1, 1, 1], [], []>} : vector<8x4xf32>, vector<8x32xf32>, vector<4x32xf32> -> vector<4x32xf32>
    %cst_56 = arith.constant dense<0.000000e+00> : vector<4x8xf32>
    %115 = tpu.matmul %113, %50, %cst_56 {dimension_numbers = #tpu.dot_dimension_numbers<[0], [0], [1], [1], [0, 1, 1, 1], [], []>} : vector<8x4xf32>, vector<8x8xf32>, vector<4x8xf32> -> vector<4x8xf32>
    %cst_57 = arith.constant dense<0.000000e+00> : vector<4x4xf32>
    %116 = tpu.matmul %115, %113, %cst_57 {dimension_numbers = #tpu.dot_dimension_numbers<[1], [0], [0], [1], [0, 0, 1, 1], [], []>} : vector<4x8xf32>, vector<8x4xf32>, vector<4x4xf32> -> vector<4x4xf32>
    %cst_58 = arith.constant dense<0.000000e+00> : vector<4x4xf32>
    %117 = tpu.matmul %113, %113, %cst_58 {dimension_numbers = #tpu.dot_dimension_numbers<[0], [0], [1], [1], [0, 1, 1, 1], [], []>} : vector<8x4xf32>, vector<8x4xf32>, vector<4x4xf32> -> vector<4x4xf32>
    %118 = tpu.iota {dimensions = array<i32: 0>} : vector<4x4xi32>
    %119 = tpu.iota {dimensions = array<i32: 1>} : vector<4x4xi32>
    %120 = arith.cmpi eq, %118, %119 : vector<4x4xi32>
    %121 = arith.extui %120 : vector<4x4xi1> to vector<4x4xi32>
    %122 = arith.sitofp %121 : vector<4x4xi32> to vector<4x4xf32>
    %cst_59 = arith.constant dense<0.000000e+00> : vector<8xf32>
    %123 = vector.multi_reduction <add>, %50, %cst_59 [1] : vector<8x8xf32> to vector<8xf32>
    %124 = vector.shape_cast %123 : vector<8xf32> to vector<8x1xf32>
    %125 = arith.mulf %116, %122 : vector<4x4xf32>
    %126 = vector.shape_cast %125 : vector<4x4xf32> to vector<1x4x4xf32>
    %cst_60 = arith.constant dense<0.000000e+00> : vector<1xf32>
    %127 = vector.multi_reduction <add>, %126, %cst_60 [1, 2] : vector<1x4x4xf32> to vector<1xf32>
    %128 = vector.shape_cast %127 : vector<1xf32> to vector<1x1x1xf32>
    %129 = vector.extract %128[0, 0, 0] : f32 from vector<1x1x1xf32>
    %130 = vector.broadcast %124 : vector<8x1xf32> to vector<8x4xf32>
    %131 = arith.mulf %130, %113 : vector<8x4xf32>
    %132 = arith.mulf %131, %113 : vector<8x4xf32>
    %133 = vector.shape_cast %132 : vector<8x4xf32> to vector<1x8x4xf32>
    %cst_61 = arith.constant dense<0.000000e+00> : vector<1xf32>
    %134 = vector.multi_reduction <add>, %133, %cst_61 [1, 2] : vector<1x8x4xf32> to vector<1xf32>
    %135 = vector.shape_cast %134 : vector<1xf32> to vector<1x1x1xf32>
    %136 = vector.extract %135[0, 0, 0] : f32 from vector<1x1x1xf32>
    %cst_62 = arith.constant 9.99999971E-10 : f32
    %137 = arith.addf %136, %cst_62 : f32
    %138 = arith.divf %129, %137 : f32
    %cst_63 = arith.constant 1.000000e+00 : f32
    %139 = arith.subf %cst_63, %138 : f32
    %140 = arith.mulf %117, %117 : vector<4x4xf32>
    %141 = vector.shape_cast %140 : vector<4x4xf32> to vector<1x4x4xf32>
    %cst_64 = arith.constant dense<0.000000e+00> : vector<1xf32>
    %142 = vector.multi_reduction <add>, %141, %cst_64 [1, 2] : vector<1x4x4xf32> to vector<1xf32>
    %143 = vector.shape_cast %142 : vector<1xf32> to vector<1x1x1xf32>
    %144 = vector.extract %143[0, 0, 0] : f32 from vector<1x1x1xf32>
    %cst_65 = arith.constant 9.99999971E-10 : f32
    %145 = arith.addf %144, %cst_65 : f32
    %146 = math.sqrt %145 : f32
    %147 = vector.broadcast %146 : f32 to vector<4x4xf32>
    %148 = arith.divf %117, %147 : vector<4x4xf32>
    %cst_66 = arith.constant 2.000000e+00 : f32
    %149 = vector.broadcast %cst_66 : f32 to vector<4x4xf32>
    %150 = arith.divf %122, %149 : vector<4x4xf32>
    %151 = arith.subf %148, %150 : vector<4x4xf32>
    %152 = arith.mulf %151, %151 : vector<4x4xf32>
    %153 = vector.shape_cast %152 : vector<4x4xf32> to vector<1x4x4xf32>
    %cst_67 = arith.constant dense<0.000000e+00> : vector<1xf32>
    %154 = vector.multi_reduction <add>, %153, %cst_67 [1, 2] : vector<1x4x4xf32> to vector<1xf32>
    %155 = vector.shape_cast %154 : vector<1xf32> to vector<1x1x1xf32>
    %156 = vector.extract %155[0, 0, 0] : f32 from vector<1x1x1xf32>
    %cst_68 = arith.constant 9.99999971E-10 : f32
    %157 = arith.addf %156, %cst_68 : f32
    %158 = math.sqrt %157 : f32
    %cst_69 = arith.constant dense<0.000000e+00> : vector<4x64xf32>
    %159 = tpu.matmul %114, %8, %cst_69 {dimension_numbers = #tpu.dot_dimension_numbers<[1], [0], [0], [1], [0, 0, 1, 1], [], []>} : vector<4x32xf32>, vector<32x64xf32>, vector<4x64xf32> -> vector<4x64xf32>
    %160 = vector.extract_strided_slice %159 {offsets = [0, 0], sizes = [4, 32], strides = [1, 1]} : vector<4x64xf32> to vector<4x32xf32>
    %161 = vector.extract_strided_slice %159 {offsets = [0, 32], sizes = [4, 32], strides = [1, 1]} : vector<4x64xf32> to vector<4x32xf32>
    %cst_70 = arith.constant dense<0.000000e+00> : vector<4x32xf32>
    %162 = tpu.matmul %116, %160, %cst_70 {dimension_numbers = #tpu.dot_dimension_numbers<[1], [0], [0], [1], [0, 0, 1, 1], [], []>} : vector<4x4xf32>, vector<4x32xf32>, vector<4x32xf32> -> vector<4x32xf32>
    %163 = arith.addf %162, %161 : vector<4x32xf32>
    %164 = vector.broadcast %9 : vector<1x32xf32> to vector<4x32xf32>
    %165 = arith.addf %163, %164 : vector<4x32xf32>
    %cst_71 = arith.constant 0.000000e+00 : f32
    %166 = vector.broadcast %cst_71 : f32 to vector<4x32xf32>
    %167 = arith.maximumf %165, %166 : vector<4x32xf32>
    %cst_72 = arith.constant dense<0.000000e+00> : vector<1x32xf32>
    %168 = tpu.matmul %14, %167, %cst_72 {dimension_numbers = #tpu.dot_dimension_numbers<[1], [0], [0], [1], [0, 0, 1, 1], [], []>} : vector<1x4xf32>, vector<4x32xf32>, vector<1x32xf32> -> vector<1x32xf32>
    %cst_73 = arith.constant dense<0.000000e+00> : vector<1x2xf32>
    %169 = tpu.matmul %168, %10, %cst_73 {dimension_numbers = #tpu.dot_dimension_numbers<[1], [0], [0], [1], [0, 0, 1, 1], [], []>} : vector<1x32xf32>, vector<32x2xf32>, vector<1x2xf32> -> vector<1x2xf32>
    %170 = arith.addf %169, %11 : vector<1x2xf32>
    %c0_74 = arith.constant 0 : index
    %c0_75 = arith.constant 0 : index
    %171 = vector.load %arg15[%c0_74, %c0_75] : memref<2x2xf32, #tpu.memory_space<vmem>>, vector<1x2xf32>
    tpu.vector_store %arg15[%c0_74, %c0_75], %170 {strides = array<i32>} : memref<2x2xf32, #tpu.memory_space<vmem>>, vector<1x2xf32>,
    %cst_76 = arith.constant 0.000000e+00 : f32
    %172 = arith.addf %cst_76, %73 : f32
    %173 = arith.addf %172, %139 : f32
    %cst_77 = arith.constant 0.000000e+00 : f32
    %174 = arith.addf %cst_77, %92 : f32
    %175 = arith.addf %174, %158 : f32
    %c1 = arith.constant 1 : index
    %c0_78 = arith.constant 0 : index
    %c0_79 = arith.constant 0 : index
    %176 = vector.load %arg2[%c1, %c0_78, %c0_79] : memref<2x16x16xf32, #tpu.memory_space<vmem>>, vector<1x16x16xf32>
    %177 = vector.shape_cast %176 : vector<1x16x16xf32> to vector<16x16xf32>
    %c1_80 = arith.constant 1 : index
    %178 = memref.load %arg0[%c1_80] : memref<2xi32, #tpu.memory_space<smem>>
    %179 = vector.broadcast %178 : i32 to vector<16x1xi32>
    %180 = arith.cmpi slt, %15, %179 : vector<16x1xi32>
    %181 = arith.extui %180 : vector<16x1xi1> to vector<16x1xi32>
    %182 = arith.sitofp %181 : vector<16x1xi32> to vector<16x1xf32>
    %183 = vector.extract_strided_slice %13 {offsets = [16, 0], sizes = [16, 64], strides = [1, 1]} : vector<32x64xf32> to vector<16x64xf32>
    %184 = vector.extract_strided_slice %183 {offsets = [0, 0], sizes = [16, 32], strides = [1, 1]} : vector<16x64xf32> to vector<16x32xf32>
    %185 = vector.extract_strided_slice %183 {offsets = [0, 32], sizes = [16, 32], strides = [1, 1]} : vector<16x64xf32> to vector<16x32xf32>
    %cst_81 = arith.constant dense<0.000000e+00> : vector<16x32xf32>
    %186 = tpu.matmul %177, %184, %cst_81 {dimension_numbers = #tpu.dot_dimension_numbers<[1], [0], [0], [1], [0, 0, 1, 1], [], []>} : vector<16x16xf32>, vector<16x32xf32>, vector<16x32xf32> -> vector<16x32xf32>
    %187 = arith.addf %186, %185 : vector<16x32xf32>
    %188 = vector.broadcast %1 : vector<1x32xf32> to vector<16x32xf32>
    %189 = arith.addf %187, %188 : vector<16x32xf32>
    %cst_82 = arith.constant 0.000000e+00 : f32
    %190 = vector.broadcast %cst_82 : f32 to vector<16x32xf32>
    %191 = arith.maximumf %189, %190 : vector<16x32xf32>
    %192 = vector.broadcast %182 : vector<16x1xf32> to vector<16x32xf32>
    %193 = arith.mulf %191, %192 : vector<16x32xf32>
    %cst_83 = arith.constant dense<0.000000e+00> : vector<16x8xf32>
    %194 = tpu.matmul %193, %2, %cst_83 {dimension_numbers = #tpu.dot_dimension_numbers<[1], [0], [0], [1], [0, 0, 1, 1], [], []>} : vector<16x32xf32>, vector<32x8xf32>, vector<16x8xf32> -> vector<16x8xf32>
    %195 = vector.broadcast %3 : vector<1x8xf32> to vector<16x8xf32>
    %196 = arith.addf %194, %195 : vector<16x8xf32>
    %cst_84 = arith.constant dense<0xFF800000> : vector<16xf32>
    %197 = vector.multi_reduction <maximumf>, %196, %cst_84 [1] : vector<16x8xf32> to vector<16xf32>
    %198 = vector.shape_cast %197 : vector<16xf32> to vector<16x1xf32>
    %199 = vector.broadcast %198 : vector<16x1xf32> to vector<16x8xf32>
    %200 = arith.subf %196, %199 : vector<16x8xf32>
    %201 = math.exp %200 : vector<16x8xf32>
    %cst_85 = arith.constant dense<0.000000e+00> : vector<16xf32>
    %202 = vector.multi_reduction <add>, %201, %cst_85 [1] : vector<16x8xf32> to vector<16xf32>
    %203 = vector.shape_cast %202 : vector<16xf32> to vector<16x1xf32>
    %204 = vector.broadcast %203 : vector<16x1xf32> to vector<16x8xf32>
    %205 = arith.divf %201, %204 : vector<16x8xf32>
    %206 = vector.broadcast %182 : vector<16x1xf32> to vector<16x8xf32>
    %207 = arith.mulf %205, %206 : vector<16x8xf32>
    %cst_86 = arith.constant dense<0.000000e+00> : vector<8x32xf32>
    %208 = tpu.matmul %207, %193, %cst_86 {dimension_numbers = #tpu.dot_dimension_numbers<[0], [0], [1], [1], [0, 1, 1, 1], [], []>} : vector<16x8xf32>, vector<16x32xf32>, vector<8x32xf32> -> vector<8x32xf32>
    %cst_87 = arith.constant dense<0.000000e+00> : vector<8x16xf32>
    %209 = tpu.matmul %207, %177, %cst_87 {dimension_numbers = #tpu.dot_dimension_numbers<[0], [0], [1], [1], [0, 1, 1, 1], [], []>} : vector<16x8xf32>, vector<16x16xf32>, vector<8x16xf32> -> vector<8x16xf32>
    %cst_88 = arith.constant dense<0.000000e+00> : vector<8x8xf32>
    %210 = tpu.matmul %209, %207, %cst_88 {dimension_numbers = #tpu.dot_dimension_numbers<[1], [0], [0], [1], [0, 0, 1, 1], [], []>} : vector<8x16xf32>, vector<16x8xf32>, vector<8x8xf32> -> vector<8x8xf32>
    %cst_89 = arith.constant dense<0.000000e+00> : vector<8x8xf32>
    %211 = tpu.matmul %207, %207, %cst_89 {dimension_numbers = #tpu.dot_dimension_numbers<[0], [0], [1], [1], [0, 1, 1, 1], [], []>} : vector<16x8xf32>, vector<16x8xf32>, vector<8x8xf32> -> vector<8x8xf32>
    %212 = tpu.iota {dimensions = array<i32: 0>} : vector<8x8xi32>
    %213 = tpu.iota {dimensions = array<i32: 1>} : vector<8x8xi32>
    %214 = arith.cmpi eq, %212, %213 : vector<8x8xi32>
    %215 = arith.extui %214 : vector<8x8xi1> to vector<8x8xi32>
    %216 = arith.sitofp %215 : vector<8x8xi32> to vector<8x8xf32>
    %cst_90 = arith.constant dense<0.000000e+00> : vector<16xf32>
    %217 = vector.multi_reduction <add>, %177, %cst_90 [1] : vector<16x16xf32> to vector<16xf32>
    %218 = vector.shape_cast %217 : vector<16xf32> to vector<16x1xf32>
    %219 = arith.mulf %210, %216 : vector<8x8xf32>
    %220 = vector.shape_cast %219 : vector<8x8xf32> to vector<1x8x8xf32>
    %cst_91 = arith.constant dense<0.000000e+00> : vector<1xf32>
    %221 = vector.multi_reduction <add>, %220, %cst_91 [1, 2] : vector<1x8x8xf32> to vector<1xf32>
    %222 = vector.shape_cast %221 : vector<1xf32> to vector<1x1x1xf32>
    %223 = vector.extract %222[0, 0, 0] : f32 from vector<1x1x1xf32>
    %224 = vector.broadcast %218 : vector<16x1xf32> to vector<16x8xf32>
    %225 = arith.mulf %224, %207 : vector<16x8xf32>
    %226 = arith.mulf %225, %207 : vector<16x8xf32>
    %227 = vector.shape_cast %226 : vector<16x8xf32> to vector<1x16x8xf32>
    %cst_92 = arith.constant dense<0.000000e+00> : vector<1xf32>
    %228 = vector.multi_reduction <add>, %227, %cst_92 [1, 2] : vector<1x16x8xf32> to vector<1xf32>
    %229 = vector.shape_cast %228 : vector<1xf32> to vector<1x1x1xf32>
    %230 = vector.extract %229[0, 0, 0] : f32 from vector<1x1x1xf32>
    %cst_93 = arith.constant 9.99999971E-10 : f32
    %231 = arith.addf %230, %cst_93 : f32
    %232 = arith.divf %223, %231 : f32
    %cst_94 = arith.constant 1.000000e+00 : f32
    %233 = arith.subf %cst_94, %232 : f32
    %234 = arith.mulf %211, %211 : vector<8x8xf32>
    %235 = vector.shape_cast %234 : vector<8x8xf32> to vector<1x8x8xf32>
    %cst_95 = arith.constant dense<0.000000e+00> : vector<1xf32>
    %236 = vector.multi_reduction <add>, %235, %cst_95 [1, 2] : vector<1x8x8xf32> to vector<1xf32>
    %237 = vector.shape_cast %236 : vector<1xf32> to vector<1x1x1xf32>
    %238 = vector.extract %237[0, 0, 0] : f32 from vector<1x1x1xf32>
    %cst_96 = arith.constant 9.99999971E-10 : f32
    %239 = arith.addf %238, %cst_96 : f32
    %240 = math.sqrt %239 : f32
    %241 = vector.broadcast %240 : f32 to vector<8x8xf32>
    %242 = arith.divf %211, %241 : vector<8x8xf32>
    %cst_97 = arith.constant 2.82842708 : f32
    %243 = vector.broadcast %cst_97 : f32 to vector<8x8xf32>
    %244 = arith.divf %216, %243 : vector<8x8xf32>
    %245 = arith.subf %242, %244 : vector<8x8xf32>
    %246 = arith.mulf %245, %245 : vector<8x8xf32>
    %247 = vector.shape_cast %246 : vector<8x8xf32> to vector<1x8x8xf32>
    %cst_98 = arith.constant dense<0.000000e+00> : vector<1xf32>
    %248 = vector.multi_reduction <add>, %247, %cst_98 [1, 2] : vector<1x8x8xf32> to vector<1xf32>
    %249 = vector.shape_cast %248 : vector<1xf32> to vector<1x1x1xf32>
    %250 = vector.extract %249[0, 0, 0] : f32 from vector<1x1x1xf32>
    %cst_99 = arith.constant 9.99999971E-10 : f32
    %251 = arith.addf %250, %cst_99 : f32
    %252 = math.sqrt %251 : f32
    %cst_100 = arith.constant dense<0.000000e+00> : vector<8x64xf32>
    %253 = tpu.matmul %208, %4, %cst_100 {dimension_numbers = #tpu.dot_dimension_numbers<[1], [0], [0], [1], [0, 0, 1, 1], [], []>} : vector<8x32xf32>, vector<32x64xf32>, vector<8x64xf32> -> vector<8x64xf32>
    %254 = vector.extract_strided_slice %253 {offsets = [0, 0], sizes = [8, 32], strides = [1, 1]} : vector<8x64xf32> to vector<8x32xf32>
    %255 = vector.extract_strided_slice %253 {offsets = [0, 32], sizes = [8, 32], strides = [1, 1]} : vector<8x64xf32> to vector<8x32xf32>
    %cst_101 = arith.constant dense<0.000000e+00> : vector<8x32xf32>
    %256 = tpu.matmul %210, %254, %cst_101 {dimension_numbers = #tpu.dot_dimension_numbers<[1], [0], [0], [1], [0, 0, 1, 1], [], []>} : vector<8x8xf32>, vector<8x32xf32>, vector<8x32xf32> -> vector<8x32xf32>
    %257 = arith.addf %256, %255 : vector<8x32xf32>
    %258 = vector.broadcast %5 : vector<1x32xf32> to vector<8x32xf32>
    %259 = arith.addf %257, %258 : vector<8x32xf32>
    %cst_102 = arith.constant 0.000000e+00 : f32
    %260 = vector.broadcast %cst_102 : f32 to vector<8x32xf32>
    %261 = arith.maximumf %259, %260 : vector<8x32xf32>
    %cst_103 = arith.constant dense<0.000000e+00> : vector<8x4xf32>
    %262 = tpu.matmul %261, %6, %cst_103 {dimension_numbers = #tpu.dot_dimension_numbers<[1], [0], [0], [1], [0, 0, 1, 1], [], []>} : vector<8x32xf32>, vector<32x4xf32>, vector<8x4xf32> -> vector<8x4xf32>
    %263 = vector.broadcast %7 : vector<1x4xf32> to vector<8x4xf32>
    %264 = arith.addf %262, %263 : vector<8x4xf32>
    %cst_104 = arith.constant dense<0xFF800000> : vector<8xf32>
    %265 = vector.multi_reduction <maximumf>, %264, %cst_104 [1] : vector<8x4xf32> to vector<8xf32>
    %266 = vector.shape_cast %265 : vector<8xf32> to vector<8x1xf32>
    %267 = vector.broadcast %266 : vector<8x1xf32> to vector<8x4xf32>
    %268 = arith.subf %264, %267 : vector<8x4xf32>
    %269 = math.exp %268 : vector<8x4xf32>
    %cst_105 = arith.constant dense<0.000000e+00> : vector<8xf32>
    %270 = vector.multi_reduction <add>, %269, %cst_105 [1] : vector<8x4xf32> to vector<8xf32>
    %271 = vector.shape_cast %270 : vector<8xf32> to vector<8x1xf32>
    %272 = vector.broadcast %271 : vector<8x1xf32> to vector<8x4xf32>
    %273 = arith.divf %269, %272 : vector<8x4xf32>
    %cst_106 = arith.constant dense<0.000000e+00> : vector<4x32xf32>
    %274 = tpu.matmul %273, %261, %cst_106 {dimension_numbers = #tpu.dot_dimension_numbers<[0], [0], [1], [1], [0, 1, 1, 1], [], []>} : vector<8x4xf32>, vector<8x32xf32>, vector<4x32xf32> -> vector<4x32xf32>
    %cst_107 = arith.constant dense<0.000000e+00> : vector<4x8xf32>
    %275 = tpu.matmul %273, %210, %cst_107 {dimension_numbers = #tpu.dot_dimension_numbers<[0], [0], [1], [1], [0, 1, 1, 1], [], []>} : vector<8x4xf32>, vector<8x8xf32>, vector<4x8xf32> -> vector<4x8xf32>
    %cst_108 = arith.constant dense<0.000000e+00> : vector<4x4xf32>
    %276 = tpu.matmul %275, %273, %cst_108 {dimension_numbers = #tpu.dot_dimension_numbers<[1], [0], [0], [1], [0, 0, 1, 1], [], []>} : vector<4x8xf32>, vector<8x4xf32>, vector<4x4xf32> -> vector<4x4xf32>
    %cst_109 = arith.constant dense<0.000000e+00> : vector<4x4xf32>
    %277 = tpu.matmul %273, %273, %cst_109 {dimension_numbers = #tpu.dot_dimension_numbers<[0], [0], [1], [1], [0, 1, 1, 1], [], []>} : vector<8x4xf32>, vector<8x4xf32>, vector<4x4xf32> -> vector<4x4xf32>
    %278 = tpu.iota {dimensions = array<i32: 0>} : vector<4x4xi32>
    %279 = tpu.iota {dimensions = array<i32: 1>} : vector<4x4xi32>
    %280 = arith.cmpi eq, %278, %279 : vector<4x4xi32>
    %281 = arith.extui %280 : vector<4x4xi1> to vector<4x4xi32>
    %282 = arith.sitofp %281 : vector<4x4xi32> to vector<4x4xf32>
    %cst_110 = arith.constant dense<0.000000e+00> : vector<8xf32>
    %283 = vector.multi_reduction <add>, %210, %cst_110 [1] : vector<8x8xf32> to vector<8xf32>
    %284 = vector.shape_cast %283 : vector<8xf32> to vector<8x1xf32>
    %285 = arith.mulf %276, %282 : vector<4x4xf32>
    %286 = vector.shape_cast %285 : vector<4x4xf32> to vector<1x4x4xf32>
    %cst_111 = arith.constant dense<0.000000e+00> : vector<1xf32>
    %287 = vector.multi_reduction <add>, %286, %cst_111 [1, 2] : vector<1x4x4xf32> to vector<1xf32>
    %288 = vector.shape_cast %287 : vector<1xf32> to vector<1x1x1xf32>
    %289 = vector.extract %288[0, 0, 0] : f32 from vector<1x1x1xf32>
    %290 = vector.broadcast %284 : vector<8x1xf32> to vector<8x4xf32>
    %291 = arith.mulf %290, %273 : vector<8x4xf32>
    %292 = arith.mulf %291, %273 : vector<8x4xf32>
    %293 = vector.shape_cast %292 : vector<8x4xf32> to vector<1x8x4xf32>
    %cst_112 = arith.constant dense<0.000000e+00> : vector<1xf32>
    %294 = vector.multi_reduction <add>, %293, %cst_112 [1, 2] : vector<1x8x4xf32> to vector<1xf32>
    %295 = vector.shape_cast %294 : vector<1xf32> to vector<1x1x1xf32>
    %296 = vector.extract %295[0, 0, 0] : f32 from vector<1x1x1xf32>
    %cst_113 = arith.constant 9.99999971E-10 : f32
    %297 = arith.addf %296, %cst_113 : f32
    %298 = arith.divf %289, %297 : f32
    %cst_114 = arith.constant 1.000000e+00 : f32
    %299 = arith.subf %cst_114, %298 : f32
    %300 = arith.mulf %277, %277 : vector<4x4xf32>
    %301 = vector.shape_cast %300 : vector<4x4xf32> to vector<1x4x4xf32>
    %cst_115 = arith.constant dense<0.000000e+00> : vector<1xf32>
    %302 = vector.multi_reduction <add>, %301, %cst_115 [1, 2] : vector<1x4x4xf32> to vector<1xf32>
    %303 = vector.shape_cast %302 : vector<1xf32> to vector<1x1x1xf32>
    %304 = vector.extract %303[0, 0, 0] : f32 from vector<1x1x1xf32>
    %cst_116 = arith.constant 9.99999971E-10 : f32
    %305 = arith.addf %304, %cst_116 : f32
    %306 = math.sqrt %305 : f32
    %307 = vector.broadcast %306 : f32 to vector<4x4xf32>
    %308 = arith.divf %277, %307 : vector<4x4xf32>
    %cst_117 = arith.constant 2.000000e+00 : f32
    %309 = vector.broadcast %cst_117 : f32 to vector<4x4xf32>
    %310 = arith.divf %282, %309 : vector<4x4xf32>
    %311 = arith.subf %308, %310 : vector<4x4xf32>
    %312 = arith.mulf %311, %311 : vector<4x4xf32>
    %313 = vector.shape_cast %312 : vector<4x4xf32> to vector<1x4x4xf32>
    %cst_118 = arith.constant dense<0.000000e+00> : vector<1xf32>
    %314 = vector.multi_reduction <add>, %313, %cst_118 [1, 2] : vector<1x4x4xf32> to vector<1xf32>
    %315 = vector.shape_cast %314 : vector<1xf32> to vector<1x1x1xf32>
    %316 = vector.extract %315[0, 0, 0] : f32 from vector<1x1x1xf32>
    %cst_119 = arith.constant 9.99999971E-10 : f32
    %317 = arith.addf %316, %cst_119 : f32
    %318 = math.sqrt %317 : f32
    %cst_120 = arith.constant dense<0.000000e+00> : vector<4x64xf32>
    %319 = tpu.matmul %274, %8, %cst_120 {dimension_numbers = #tpu.dot_dimension_numbers<[1], [0], [0], [1], [0, 0, 1, 1], [], []>} : vector<4x32xf32>, vector<32x64xf32>, vector<4x64xf32> -> vector<4x64xf32>
    %320 = vector.extract_strided_slice %319 {offsets = [0, 0], sizes = [4, 32], strides = [1, 1]} : vector<4x64xf32> to vector<4x32xf32>
    %321 = vector.extract_strided_slice %319 {offsets = [0, 32], sizes = [4, 32], strides = [1, 1]} : vector<4x64xf32> to vector<4x32xf32>
    %cst_121 = arith.constant dense<0.000000e+00> : vector<4x32xf32>
    %322 = tpu.matmul %276, %320, %cst_121 {dimension_numbers = #tpu.dot_dimension_numbers<[1], [0], [0], [1], [0, 0, 1, 1], [], []>} : vector<4x4xf32>, vector<4x32xf32>, vector<4x32xf32> -> vector<4x32xf32>
    %323 = arith.addf %322, %321 : vector<4x32xf32>
    %324 = vector.broadcast %9 : vector<1x32xf32> to vector<4x32xf32>
    %325 = arith.addf %323, %324 : vector<4x32xf32>
    %cst_122 = arith.constant 0.000000e+00 : f32
    %326 = vector.broadcast %cst_122 : f32 to vector<4x32xf32>
    %327 = arith.maximumf %325, %326 : vector<4x32xf32>
    %cst_123 = arith.constant dense<0.000000e+00> : vector<1x32xf32>
    %328 = tpu.matmul %14, %327, %cst_123 {dimension_numbers = #tpu.dot_dimension_numbers<[1], [0], [0], [1], [0, 0, 1, 1], [], []>} : vector<1x4xf32>, vector<4x32xf32>, vector<1x32xf32> -> vector<1x32xf32>
    %cst_124 = arith.constant dense<0.000000e+00> : vector<1x2xf32>
    %329 = tpu.matmul %328, %10, %cst_124 {dimension_numbers = #tpu.dot_dimension_numbers<[1], [0], [0], [1], [0, 0, 1, 1], [], []>} : vector<1x32xf32>, vector<32x2xf32>, vector<1x2xf32> -> vector<1x2xf32>
    %330 = arith.addf %329, %11 : vector<1x2xf32>
    %c1_125 = arith.constant 1 : index
    %c0_126 = arith.constant 0 : index
    %331 = vector.load %arg15[%c1_125, %c0_126] : memref<2x2xf32, #tpu.memory_space<vmem>>, vector<1x2xf32>
    tpu.vector_store %arg15[%c1_125, %c0_126], %330 {strides = array<i32>} : memref<2x2xf32, #tpu.memory_space<vmem>>, vector<1x2xf32>,
    %332 = arith.addf %173, %233 : f32
    %333 = arith.addf %332, %299 : f32
    %334 = arith.addf %175, %252 : f32
    %335 = arith.addf %334, %318 : f32
    %cst_127 = arith.constant 5.000000e-01 : f32
    %336 = arith.mulf %333, %cst_127 : f32
    %337 = vector.broadcast %336 : f32 to vector<1x1xf32>
    %c0_128 = arith.constant 0 : index
    %c0_129 = arith.constant 0 : index
    %338 = vector.load %arg16[%c0_128, %c0_129] : memref<1x1xf32, #tpu.memory_space<vmem>>, vector<1x1xf32>
    tpu.vector_store %arg16[%c0_128, %c0_129], %337 {strides = array<i32>} : memref<1x1xf32, #tpu.memory_space<vmem>>, vector<1x1xf32>,
    %cst_130 = arith.constant 5.000000e-01 : f32
    %339 = arith.mulf %335, %cst_130 : f32
    %340 = vector.broadcast %339 : f32 to vector<1x1xf32>
    %c0_131 = arith.constant 0 : index
    %c0_132 = arith.constant 0 : index
    %341 = vector.load %arg17[%c0_131, %c0_132] : memref<1x1xf32, #tpu.memory_space<vmem>>, vector<1x1xf32>
    tpu.vector_store %arg17[%c0_131, %c0_132], %340 {strides = array<i32>} : memref<1x1xf32, #tpu.memory_space<vmem>>, vector<1x1xf32>,
    return
  }
}

</mosaic_0001>

<llo_original>
// kernel: classification_forward.1
$region0: #{classification_forward.1}
  #allocation0 [shape = 'u32[]', space=smem, size = 0x4, offset = 0x4, fixed_abs, tag = 'smem constant byte address 0x4 - core index']
  #allocation1 [shape = 'u32[72,128]{1,0:T(1,128)}', space=vmem, size = 0x9000, scoped, tag = 'internal scratch']
  %s0 = inlined_call_operand.vmem [shape: s32[2], index: 0, kind: input, shape index: {}]
  %s1 = inlined_call_operand.vmem [shape: f32[32,4], index: 1, kind: input, shape index: {}]
  %s2 = inlined_call_operand.vmem [shape: f32[2,16,16], index: 2, kind: input, shape index: {}]
  %s3 = inlined_call_operand.vmem [shape: f32[4,64], index: 3, kind: input, shape index: {}]
  %s4 = inlined_call_operand.vmem [shape: f32[1,32], index: 4, kind: input, shape index: {}]
  %s5 = inlined_call_operand.vmem [shape: f32[32,8], index: 5, kind: input, shape index: {}]
  %s6 = inlined_call_operand.vmem [shape: f32[1,8], index: 6, kind: input, shape index: {}]
  %s7 = inlined_call_operand.vmem [shape: f32[32,64], index: 7, kind: input, shape index: {}]
  %s8 = inlined_call_operand.vmem [shape: f32[1,32], index: 8, kind: input, shape index: {}]
  %s9 = inlined_call_operand.vmem [shape: f32[32,4], index: 9, kind: input, shape index: {}]
  %s10 = inlined_call_operand.vmem [shape: f32[1,4], index: 10, kind: input, shape index: {}]
  %s11 = inlined_call_operand.vmem [shape: f32[32,64], index: 11, kind: input, shape index: {}]
  %s12 = inlined_call_operand.vmem [shape: f32[1,32], index: 12, kind: input, shape index: {}]
  %s13 = inlined_call_operand.vmem [shape: f32[32,2], index: 13, kind: input, shape index: {}]
  %s14 = inlined_call_operand.vmem [shape: f32[1,2], index: 14, kind: input, shape index: {}]
  %s15 = inlined_call_operand.hbm [shape: f32[2,2], index: 15, kind: output, shape index: {0}]
  %s16 = inlined_call_operand.hbm [shape: f32[1,1], index: 16, kind: output, shape index: {1}]
  %s17 = inlined_call_operand.hbm [shape: f32[1,1], index: 17, kind: output, shape index: {2}]
  %18 = xla_tuple %s15, %s16, %s17
  %s19 = sld [smem:[#allocation0]]
  $region90: #{classification_forward.1} parent=0
    _
  %s21 = ssub.s32 1, %s19
  %s22 = scalar_select 0, %s21, %s19
  $region1: #{classification_forward.1} parent=0
    #allocation2 [shape = 'u8[512]{0}', space=smem, size = 0x200, scoped, tag = 'input window, operand 0, single buffered']
    #allocation3 [shape = 's32[1]{0}', space=sflag, size = 0x4, scoped, tag = 'scoped memory for classification_forward.1']
    #allocation4 [shape = 's32[1]{0}', space=sflag, size = 0x4, scoped, tag = 'scoped memory for classification_forward.1']
    #allocation5 [shape = 'u8[1024]{0}', space=vmem, size = 0x400, scoped, tag = 'output window, operand 0, single buffered']
    #allocation6 [shape = 'u8[512]{0}', space=vmem, size = 0x400, scoped, tag = 'output window, operand 1, single buffered']
    #allocation7 [shape = 's32[1]{0}', space=sflag, size = 0x4, scoped, tag = 'scoped memory for classification_forward.1']
    #allocation8 [shape = 'u8[512]{0}', space=vmem, size = 0x400, scoped, tag = 'output window, operand 2, single buffered']
    %23 = vsyncpa [#allocation4], 0
    %24 = vsyncpa [#allocation3], 0
    %25 = vsyncpa [#allocation7], 0
    // Predicated region
    $region2: #{classification_forward.1} parent=1 // pred_check
      _
    $region3: #{classification_forward.1} parent=1 // pred_check_branch
      %27 = sbr.rel (0) target = $region5
    $region4: #{classification_forward.1} parent=1 // pred_region
      %29 = vsyncadd [#allocation4], 0
      %s31 = sshll.u32 %s0, 4
      %s32 = int_to_ptr.vmem [resolvable:$true] %s31
      %34 = dma.vmem_to_smem %s32, 16, [#allocation2], [#allocation4]
    $region5: #{classification_forward.1} parent=1 // pred_fallthru
      _
    // Predicated region
    $region6: #{classification_forward.1} parent=1 // pred_check
      _
    $region7: #{classification_forward.1} parent=1 // pred_check_branch
      %36 = sbr.rel (0) target = $region9
    $region8: #{classification_forward.1} parent=1 // pred_region
      _
    $region9: #{classification_forward.1} parent=1 // pred_fallthru
      _
    // Predicated region
    $region10: #{classification_forward.1} parent=1 // pred_check
      _
    $region11: #{classification_forward.1} parent=1 // pred_check_branch
      %38 = sbr.rel (0) target = $region13
    $region12: #{classification_forward.1} parent=1 // pred_region
      _
    $region13: #{classification_forward.1} parent=1 // pred_fallthru
      _
    // Predicated region
    $region14: #{classification_forward.1} parent=1 // pred_check
      _
    $region15: #{classification_forward.1} parent=1 // pred_check_branch
      %40 = sbr.rel (0) target = $region17
    $region16: #{classification_forward.1} parent=1 // pred_region
      _
    $region17: #{classification_forward.1} parent=1 // pred_fallthru
      _
    // Predicated region
    $region18: #{classification_forward.1} parent=1 // pred_check
      _
    $region19: #{classification_forward.1} parent=1 // pred_check_branch
      %42 = sbr.rel (0) target = $region21
    $region20: #{classification_forward.1} parent=1 // pred_region
      _
    $region21: #{classification_forward.1} parent=1 // pred_fallthru
      _
    // Predicated region
    $region22: #{classification_forward.1} parent=1 // pred_check
      _
    $region23: #{classification_forward.1} parent=1 // pred_check_branch
      %44 = sbr.rel (0) target = $region25
    $region24: #{classification_forward.1} parent=1 // pred_region
      _
    $region25: #{classification_forward.1} parent=1 // pred_fallthru
      _
    // Predicated region
    $region26: #{classification_forward.1} parent=1 // pred_check
      _
    $region27: #{classification_forward.1} parent=1 // pred_check_branch
      %46 = sbr.rel (0) target = $region29
    $region28: #{classification_forward.1} parent=1 // pred_region
      _
    $region29: #{classification_forward.1} parent=1 // pred_fallthru
      _
    // Predicated region
    $region30: #{classification_forward.1} parent=1 // pred_check
      _
    $region31: #{classification_forward.1} parent=1 // pred_check_branch
      %48 = sbr.rel (0) target = $region33
    $region32: #{classification_forward.1} parent=1 // pred_region
      _
    $region33: #{classification_forward.1} parent=1 // pred_fallthru
      _
    // Predicated region
    $region34: #{classification_forward.1} parent=1 // pred_check
      _
    $region35: #{classification_forward.1} parent=1 // pred_check_branch
      %50 = sbr.rel (0) target = $region37
    $region36: #{classification_forward.1} parent=1 // pred_region
      _
    $region37: #{classification_forward.1} parent=1 // pred_fallthru
      _
    // Predicated region
    $region38: #{classification_forward.1} parent=1 // pred_check
      _
    $region39: #{classification_forward.1} parent=1 // pred_check_branch
      %52 = sbr.rel (0) target = $region41
    $region40: #{classification_forward.1} parent=1 // pred_region
      _
    $region41: #{classification_forward.1} parent=1 // pred_fallthru
      _
    // Predicated region
    $region42: #{classification_forward.1} parent=1 // pred_check
      _
    $region43: #{classification_forward.1} parent=1 // pred_check_branch
      %54 = sbr.rel (0) target = $region45
    $region44: #{classification_forward.1} parent=1 // pred_region
      _
    $region45: #{classification_forward.1} parent=1 // pred_fallthru
      _
    // Predicated region
    $region46: #{classification_forward.1} parent=1 // pred_check
      _
    $region47: #{classification_forward.1} parent=1 // pred_check_branch
      %56 = sbr.rel (0) target = $region49
    $region48: #{classification_forward.1} parent=1 // pred_region
      _
    $region49: #{classification_forward.1} parent=1 // pred_fallthru
      _
    // Predicated region
    $region50: #{classification_forward.1} parent=1 // pred_check
      _
    $region51: #{classification_forward.1} parent=1 // pred_check_branch
      %58 = sbr.rel (0) target = $region53
    $region52: #{classification_forward.1} parent=1 // pred_region
      _
    $region53: #{classification_forward.1} parent=1 // pred_fallthru
      _
    // Predicated region
    $region54: #{classification_forward.1} parent=1 // pred_check
      _
    $region55: #{classification_forward.1} parent=1 // pred_check_branch
      %60 = sbr.rel (0) target = $region57
    $region56: #{classification_forward.1} parent=1 // pred_region
      _
    $region57: #{classification_forward.1} parent=1 // pred_fallthru
      _
    // Predicated region
    $region58: #{classification_forward.1} parent=1 // pred_check
      _
    $region59: #{classification_forward.1} parent=1 // pred_check_branch
      %62 = sbr.rel (0) target = $region61
    $region60: #{classification_forward.1} parent=1 // pred_region
      _
    $region61: #{classification_forward.1} parent=1 // pred_fallthru
      _
    // Predicated region
    $region62: #{classification_forward.1} parent=1 // pred_check
      _
    $region63: #{classification_forward.1} parent=1 // pred_check_branch
      %64 = sbr.rel (0) target = $region65
    $region64: #{classification_forward.1} parent=1 // pred_region
      %66 = dma.done [#allocation4], 16
    $region65: #{classification_forward.1} parent=1 // pred_fallthru
      _
    %67 = sfence
    %v68 = vld [vmem:[%s3] sm:$0xf]
    %v69 = vld [vmem:[%s4] sm:$0x1]
    %v70 = vld [vmem:[%s5] sm:$0xff]
    %v71 = vld [vmem:[%s5 + $0x8] sm:$0xff]
    %v72 = vld [vmem:[%s5 + $0x10] sm:$0xff]
    %v73 = vld [vmem:[%s5 + $0x18] sm:$0xff]
    %v74 = vld [vmem:[%s6] sm:$0x1]
    %v75 = vld [vmem:[%s7] sm:$0xff]
    %v76 = vld [vmem:[%s7 + $0x8] sm:$0xff]
    %v77 = vld [vmem:[%s7 + $0x10] sm:$0xff]
    %v78 = vld [vmem:[%s7 + $0x18] sm:$0xff]
    %v79 = vld [vmem:[%s8] sm:$0x1]
    %v80 = vld [vmem:[%s9] sm:$0xff]
    %v81 = vld [vmem:[%s9 + $0x8] sm:$0xff]
    %v82 = vld [vmem:[%s9 + $0x10] sm:$0xff]
    %v83 = vld [vmem:[%s9 + $0x18] sm:$0xff]
    %v84 = vld [vmem:[%s10] sm:$0x1]
    %v85 = vld [vmem:[%s11] sm:$0xff]
    %v86 = vld [vmem:[%s11 + $0x8] sm:$0xff]
    %v87 = vld [vmem:[%s11 + $0x10] sm:$0xff]
    %v88 = vld [vmem:[%s11 + $0x18] sm:$0xff]
    %v89 = vld [vmem:[%s12] sm:$0x1]
    %v90 = vld [vmem:[%s13] sm:$0xff]
    %v91 = vld [vmem:[%s13 + $0x8] sm:$0xff]
    %v92 = vld [vmem:[%s13 + $0x10] sm:$0xff]
    %v93 = vld [vmem:[%s13 + $0x18] sm:$0xff]
    %v94 = vld [vmem:[%s14] sm:$0x1]
    %v95 = vld [vmem:[%s1] sm:$0xff]
    %v96 = vld [vmem:[%s1 + $0x8] sm:$0xff]
    %v97 = vld [vmem:[%s1 + $0x10] sm:$0xff]
    %v98 = vld [vmem:[%s1 + $0x18] sm:$0xff]
    %vm99 = vcmask 31744
    %v101 = vsel %vm99, %v95, 0
    %v104 = vsel %vm99, %v96, 0
    %v107 = vsel %vm99, %v97, 0
    %v110 = vsel %vm99, %v98, 0
    %vm112 = vcmask 1043456
    %v114 = vsel %vm112, %v68, 0
    %116 = vmatpush.msra.mxu0 0.0
    %117 = vmatpush.msra.mxu0 0.0
    %118 = vmatpush.msra.mxu0 0.0
    %119 = vmatpush.msra.mxu0 0.0
    %120 = vmatpush.msra.mxu0 0.0
    %121 = vmatpush.msra.mxu0 0.0
    %122 = vmatpush.msra.mxu0 0.0
    %123 = vmatpush.msra.mxu0 0.0
    %124 = vmatpush.msra.mxu0 0.0
    %125 = vmatpush.msra.mxu0 0.0
    %126 = vmatpush.msra.mxu0 0.0
    %127 = vmatpush.msra.mxu0 0.0
    %128 = vmatpush.msra.mxu0 0.0
    %129 = vmatpush.msra.mxu0 0.0
    %130 = vmatpush.msra.mxu0 0.0
    %131 = vmatpush.msra.mxu0 %v114
    %132 = vmatmul.f32.gmra.mxu0 %v101
    %v133 = vpop.f32.mrf.mxu0
    %v134 = vadd.f32 0.0, %v133
    %135 = vmatmul.f32.gmra.mxu0 %v104
    %v136 = vpop.f32.mrf.mxu0
    %v137 = vadd.f32 0.0, %v136
    %138 = vmatmul.f32.gmra.mxu0 %v107
    %v139 = vpop.f32.mrf.mxu0
    %v140 = vadd.f32 0.0, %v139
    %141 = vmatmul.f32.gmra.mxu0 %v110
    %v142 = vpop.f32.mrf.mxu0
    %v143 = vadd.f32 0.0, %v142
    %144 = vdwg.mxu0
    %v145 = vlaneseq
    %v146 = vshrl.u32 %v145, 7
    %v147 = vadd.s32 %v146, 8
    %v148 = vld [vmem:[%s2] sm:$0xff]
    %v149 = vld [vmem:[%s2 + $0x8] sm:$0xff]
    %s150 = sld [smem:[#allocation2]]
    %v151 = vstv %s150
    %vm152 = vcmp.lt.s32.totalorder %v146, %v151
    %vm153 = vcmp.lt.s32.totalorder %v147, %v151
    %v154 = vsel %vm152, 1, 0
    %v155 = vsel %vm153, 1, 0
    %v156 = vcvt.s32.f32 %v154
    %v157 = vcvt.s32.f32 %v155
    %160 = vrot.lane.b32.xlu0 %v134, 96
    %v161 = vpop.permute.xlu0 %160
    %162 = vrot.lane.b32.xlu0 %v137, 96
    %v163 = vpop.permute.xlu0 %162
    %vm166 = vcmask 130048
    %v168 = vsel %vm166, %v148, 0
    %v171 = vsel %vm166, %v149, 0
    %173 = vmatpush.msra.mxu0 0.0
    %174 = vmatpush.msra.mxu0 0.0
    %175 = vmatpush.msra.mxu0 0.0
    %176 = vmatpush.msra.mxu0 0.0
    %177 = vmatpush.msra.mxu0 0.0
    %178 = vmatpush.msra.mxu0 0.0
    %179 = vmatpush.msra.mxu0 0.0
    %180 = vmatpush.msra.mxu0 0.0
    %181 = vmatpush.msra.mxu0 0.0
    %182 = vmatpush.msra.mxu0 0.0
    %183 = vmatpush.msra.mxu0 0.0
    %184 = vmatpush.msra.mxu0 0.0
    %185 = vmatpush.msra.mxu0 0.0
    %186 = vmatpush.msra.mxu0 0.0
    %187 = vmatpush.msra.mxu0 %v137
    %188 = vmatpush.msra.mxu0 %v134
    %189 = vmatmul.f32.gmra.mxu0 %v168
    %v190 = vpop.f32.mrf.mxu0
    %v191 = vadd.f32 %v161, %v190
    %192 = vmatmul.f32.gmra.mxu0 %v171
    %v193 = vpop.f32.mrf.mxu0
    %v194 = vadd.f32 %v163, %v193
    %195 = vdwg.mxu0
    %v197 = vperm.slane %v69, 0
    %v199 = vadd.f32 %v191, %v197
    %v200 = vadd.f32 %v194, %v197
    %v201 = vmax.f32 %v199, 0.0
    %v202 = vmax.f32 %v200, 0.0
    %v203 = vmul.f32 %v201, %v156
    %v204 = vmul.f32 %v202, %v157
    %v206 = vperm.slane %v74, 0
    %vm208 = vcmask 261120
    %v210 = vsel %vm208, %v203, 0
    %v213 = vsel %vm208, %v204, 0
    %215 = vmatpush.msra.mxu0 0.0
    %216 = vmatpush.msra.mxu0 0.0
    %217 = vmatpush.msra.mxu0 0.0
    %218 = vmatpush.msra.mxu0 0.0
    %219 = vmatpush.msra.mxu0 0.0
    %220 = vmatpush.msra.mxu0 0.0
    %221 = vmatpush.msra.mxu0 0.0
    %222 = vmatpush.msra.mxu0 0.0
    %223 = vmatpush.msra.mxu0 0.0
    %224 = vmatpush.msra.mxu0 0.0
    %225 = vmatpush.msra.mxu0 0.0
    %226 = vmatpush.msra.mxu0 0.0
    %227 = vmatpush.msra.mxu0 %v73
    %228 = vmatpush.msra.mxu0 %v72
    %229 = vmatpush.msra.mxu0 %v71
    %230 = vmatpush.msra.mxu0 %v70
    %231 = vmatmul.f32.gmra.mxu0 %v210
    %v232 = vpop.f32.mrf.mxu0
    %v233 = vadd.f32 %v206, %v232
    %234 = vmatmul.f32.gmra.mxu0 %v213
    %v235 = vpop.f32.mrf.mxu0
    %v236 = vadd.f32 %v206, %v235
    %237 = vdwg.mxu0
    %vm238 = vcmask 64512
    %v239 = vsel %vm238, %v233, -inf
    %240 = vmax.xlane.f32.xlu0 %v239
    %v241 = vpop.xlane.xlu0 %240
    %v242 = vsel %vm238, %v236, -inf
    %243 = vmax.xlane.f32.xlu0 %v242
    %v244 = vpop.xlane.xlu0 %243
    %v245 = vsub.f32 %v233, %v241
    %v246 = vsub.f32 %v236, %v244
    %v247 = vmul.f32 %v245, 1.442695
    %v248 = vpow.pop %v247
    %v249 = vmul.f32 %v246, 1.442695
    %v250 = vpow.pop %v249
    %v251 = vsel %vm238, %v248, 0.0
    %252 = vadd.xlane.f32.xlu0 %v251
    %v253 = vpop.xlane.xlu0 %252
    %v254 = vsel %vm238, %v250, 0.0
    %255 = vadd.xlane.f32.xlu0 %v254
    %v256 = vpop.xlane.xlu0 %255
    %v257 = vrcp.pop %v253
    %v258 = vmul.f32 %v253, %v257
    %v259 = vsub.f32 1.0, %v258
    %v260 = vmul.f32 %v257, %v259
    %v261 = vadd.f32 %v257, %v260
    %vm262 = vweird.f32 %v253
    %vm263 = vweird.f32 %v257
    %vm264 = vmor %vm262, %vm263
    %v265 = vsel %vm264, %v257, %v261
    %v266 = vand.u32 2147483647, %v253
    %vm267 = vcmp.eq.f32.partialorder %v266, 8.507059e+37
    %v268 = vand.u32 %v253, 2147483648
    %v269 = vor.u32 1.1754944e-38, %v268
    %v270 = vsel %vm267, %v269, %v265
    %v271 = vmul.f32 %v248, %v270
    %v272 = vrcp.pop %v256
    %v273 = vmul.f32 %v256, %v272
    %v274 = vsub.f32 1.0, %v273
    %v275 = vmul.f32 %v272, %v274
    %v276 = vadd.f32 %v272, %v275
    %vm277 = vweird.f32 %v256
    %vm278 = vweird.f32 %v272
    %vm279 = vmor %vm277, %vm278
    %v280 = vsel %vm279, %v272, %v276
    %v281 = vand.u32 2147483647, %v256
    %vm282 = vcmp.eq.f32.partialorder %v281, 8.507059e+37
    %v283 = vand.u32 %v256, 2147483648
    %v284 = vor.u32 1.1754944e-38, %v283
    %v285 = vsel %vm282, %v284, %v280
    %v286 = vmul.f32 %v250, %v285
    %v287 = vmul.f32 %v271, %v156
    %v288 = vmul.f32 %v286, %v157
    %289 = vxpose.xlu0.b32.start [1/16] %v287, 128
    %290 = vxpose.xlu0.b32.cont [2/16] %v288, 128
    %291 = vxpose.xlu0.b32.cont [3/16] 0.0, 128
    %292 = vxpose.xlu0.b32.cont [4/16] 0.0, 128
    %293 = vxpose.xlu0.b32.cont [5/16] 0.0, 128
    %294 = vxpose.xlu0.b32.cont [6/16] 0.0, 128
    %295 = vxpose.xlu0.b32.cont [7/16] 0.0, 128
    %296 = vxpose.xlu0.b32.cont [8/16] 0.0, 128
    %297 = vxpose.xlu0.b32.cont [9/16] 0.0, 128
    %298 = vxpose.xlu0.b32.cont [10/16] 0.0, 128
    %299 = vxpose.xlu0.b32.cont [11/16] 0.0, 128
    %300 = vxpose.xlu0.b32.cont [12/16] 0.0, 128
    %301 = vxpose.xlu0.b32.cont [13/16] 0.0, 128
    %302 = vxpose.xlu0.b32.cont [14/16] 0.0, 128
    %303 = vxpose.xlu0.b32.cont [15/16] 0.0, 128
    %304 = vxpose.xlu0.b32.end [16/16] 0.0, 128
    %v305 = vpop.trf.xlu0
    %v306 = vpop.trf.xlu0
    %v307 = vpop.trf.xlu0
    %v308 = vpop.trf.xlu0
    %v309 = vpop.trf.xlu0
    %v310 = vpop.trf.xlu0
    %v311 = vpop.trf.xlu0
    %v312 = vpop.trf.xlu0
    %v313 = vpop.trf.xlu0
    %v314 = vpop.trf.xlu0
    %v315 = vpop.trf.xlu0
    %v316 = vpop.trf.xlu0
    %v317 = vpop.trf.xlu0
    %v318 = vpop.trf.xlu0
    %v319 = vpop.trf.xlu0
    %v320 = vpop.trf.xlu0
    %v322 = vsel %vm166, %v305, 0
    %324 = vmatpush.msra.mxu0 0.0
    %325 = vmatpush.msra.mxu0 0.0
    %326 = vmatpush.msra.mxu0 0.0
    %327 = vmatpush.msra.mxu0 0.0
    %328 = vmatpush.msra.mxu0 0.0
    %329 = vmatpush.msra.mxu0 0.0
    %330 = vmatpush.msra.mxu0 0.0
    %331 = vmatpush.msra.mxu0 0.0
    %332 = vmatpush.msra.mxu0 0.0
    %333 = vmatpush.msra.mxu0 0.0
    %334 = vmatpush.msra.mxu0 0.0
    %335 = vmatpush.msra.mxu0 0.0
    %336 = vmatpush.msra.mxu0 0.0
    %337 = vmatpush.msra.mxu0 0.0
    %338 = vmatpush.msra.mxu0 %v204
    %339 = vmatpush.msra.mxu0 %v203
    %340 = vmatmul.f32.gmra.mxu0 %v322
    %v341 = vpop.f32.mrf.mxu0
    %v342 = vadd.f32 0.0, %v341
    %343 = vdwg.mxu0
    %344 = vmatpush.msra.mxu0 0.0
    %345 = vmatpush.msra.mxu0 0.0
    %346 = vmatpush.msra.mxu0 0.0
    %347 = vmatpush.msra.mxu0 0.0
    %348 = vmatpush.msra.mxu0 0.0
    %349 = vmatpush.msra.mxu0 0.0
    %350 = vmatpush.msra.mxu0 0.0
    %351 = vmatpush.msra.mxu0 0.0
    %352 = vmatpush.msra.mxu0 0.0
    %353 = vmatpush.msra.mxu0 0.0
    %354 = vmatpush.msra.mxu0 0.0
    %355 = vmatpush.msra.mxu0 0.0
    %356 = vmatpush.msra.mxu0 0.0
    %357 = vmatpush.msra.mxu0 0.0
    %358 = vmatpush.msra.mxu0 %v149
    %359 = vmatpush.msra.mxu0 %v148
    %360 = vmatmul.f32.gmra.mxu0 %v322
    %v361 = vpop.f32.mrf.mxu0
    %v362 = vadd.f32 0.0, %v361
    %363 = vdwg.mxu0
    %v365 = vsel %vm166, %v362, 0
    %367 = vmatpush.msra.mxu0 0.0
    %368 = vmatpush.msra.mxu0 0.0
    %369 = vmatpush.msra.mxu0 0.0
    %370 = vmatpush.msra.mxu0 0.0
    %371 = vmatpush.msra.mxu0 0.0
    %372 = vmatpush.msra.mxu0 0.0
    %373 = vmatpush.msra.mxu0 0.0
    %374 = vmatpush.msra.mxu0 0.0
    %375 = vmatpush.msra.mxu0 0.0
    %376 = vmatpush.msra.mxu0 0.0
    %377 = vmatpush.msra.mxu0 0.0
    %378 = vmatpush.msra.mxu0 0.0
    %379 = vmatpush.msra.mxu0 0.0
    %380 = vmatpush.msra.mxu0 0.0
    %381 = vmatpush.msra.mxu0 %v288
    %382 = vmatpush.msra.mxu0 %v287
    %383 = vmatmul.f32.gmra.mxu0 %v365
    %v384 = vpop.f32.mrf.mxu0
    %v385 = vadd.f32 0.0, %v384
    %386 = vdwg.mxu0
    %387 = vmatpush.msra.mxu0 0.0
    %388 = vmatpush.msra.mxu0 0.0
    %389 = vmatpush.msra.mxu0 0.0
    %390 = vmatpush.msra.mxu0 0.0
    %391 = vmatpush.msra.mxu0 0.0
    %392 = vmatpush.msra.mxu0 0.0
    %393 = vmatpush.msra.mxu0 0.0
    %394 = vmatpush.msra.mxu0 0.0
    %395 = vmatpush.msra.mxu0 0.0
    %396 = vmatpush.msra.mxu0 0.0
    %397 = vmatpush.msra.mxu0 0.0
    %398 = vmatpush.msra.mxu0 0.0
    %399 = vmatpush.msra.mxu0 0.0
    %400 = vmatpush.msra.mxu0 0.0
    %401 = vmatpush.msra.mxu0 %v288
    %402 = vmatpush.msra.mxu0 %v287
    %403 = vmatmul.f32.gmra.mxu0 %v322
    %v404 = vpop.f32.mrf.mxu0
    %v405 = vadd.f32 0.0, %v404
    %406 = vdwg.mxu0
    %v407 = vlaneseq
    %v408 = vand.u32 %v407, 127
    %vm409 = vcmp.eq.s32.totalorder %v146, %v408
    %v410 = vsel %vm409, 1, 0
    %v411 = vcvt.s32.f32 %v410
    %v412 = vsel %vm166, %v148, 0.0
    %413 = vadd.xlane.f32.xlu0 %v412
    %v414 = vpop.xlane.xlu0 %413
    %v415 = vsel %vm166, %v149, 0.0
    %416 = vadd.xlane.f32.xlu0 %v415
    %v417 = vpop.xlane.xlu0 %416
    %v418 = vmul.f32 %v385, %v411
    %v419 = vsel %vm238, %v418, 0.0
    %420 = vadd.xlane.f32.xlu0 %v419
    %v421 = vpop.xlane.xlu0 %420
    %v422 = vrot.slane %v421, 4
    %v423 = vadd.f32 %v421, %v422
    %v424 = vrot.slane %v423, 2
    %v425 = vadd.f32 %v423, %v424
    %v426 = vrot.slane %v425, 1
    %v427 = vadd.f32 %v425, %v426
    %s428 = vtos %v427
    %v429 = vmul.f32 %v414, %v287
    %v430 = vmul.f32 %v417, %v288
    %v431 = vmul.f32 %v429, %v287
    %v432 = vmul.f32 %v430, %v288
    %v433 = vsel %vm238, %v431, 0.0
    %v434 = vsel %vm238, %v432, 0.0
    %v435 = vadd.f32 %v433, %v434
    %436 = vadd.xlane.f32.xlu0 %v435
    %v437 = vpop.xlane.xlu0 %436
    %v438 = vrot.slane %v437, 4
    %v439 = vadd.f32 %v437, %v438
    %v440 = vrot.slane %v439, 2
    %v441 = vadd.f32 %v439, %v440
    %v442 = vrot.slane %v441, 1
    %v443 = vadd.f32 %v441, %v442
    %s444 = vtos %v443
    %s445 = sadd.f32 %s444, 1e-09
    %v446 = vstv %s445
    %v447 = vrcp.pop %v446
    %v448 = vmul.f32 %v446, %v447
    %v449 = vsub.f32 1.0, %v448
    %v450 = vmul.f32 %v447, %v449
    %v451 = vadd.f32 %v447, %v450
    %vm452 = vweird.f32 %v446
    %vm453 = vweird.f32 %v447
    %vm454 = vmor %vm452, %vm453
    %v455 = vsel %vm454, %v447, %v451
    %v456 = vand.u32 2147483647, %v446
    %vm457 = vcmp.eq.f32.partialorder %v456, 8.507059e+37
    %v458 = vand.u32 %v446, 2147483648
    %v459 = vor.u32 1.1754944e-38, %v458
    %v460 = vsel %vm457, %v459, %v455
    %s461 = vtos %v460
    %s462 = smul.f32 %s428, %s461
    %s463 = ssub.f32 1.0, %s462
    %v464 = vmul.f32 %v405, %v405
    %v465 = vsel %vm238, %v464, 0.0
    %466 = vadd.xlane.f32.xlu0 %v465
    %v467 = vpop.xlane.xlu0 %466
    %v468 = vrot.slane %v467, 4
    %v469 = vadd.f32 %v467, %v468
    %v470 = vrot.slane %v469, 2
    %v471 = vadd.f32 %v469, %v470
    %v472 = vrot.slane %v471, 1
    %v473 = vadd.f32 %v471, %v472
    %s474 = vtos %v473
    %s475 = sadd.f32 %s474, 1e-09
    %v476 = vstv %s475
    %v477 = vrsqrt.pop %v476
    %v478 = vmul.f32 %v477, %v476
    %v479 = vmul.f32 %v478, %v477
    %v480 = vmul.f32 0.5, %v479
    %v481 = vsub.f32 1.5, %v480
    %v482 = vmul.f32 %v477, %v481
    %v483 = vmul.f32 %v476, %v482
    %vm484 = vcmp.eq.f32.partialorder %v476, inf
    %v485 = vsel %vm484, %v476, %v483
    %vm486 = vcmp.eq.f32.partialorder %v476, 0.0
    %v487 = vand.u32 %v476, 2147483648
    %v488 = vsel %vm486, %v487, %v485
    %s489 = vtos %v488
    %v490 = vstv %s489
    %v491 = vrcp.pop %v490
    %v492 = vmul.f32 %v490, %v491
    %v493 = vsub.f32 1.0, %v492
    %v494 = vmul.f32 %v491, %v493
    %v495 = vadd.f32 %v491, %v494
    %vm496 = vweird.f32 %v490
    %vm497 = vweird.f32 %v491
    %vm498 = vmor %vm496, %vm497
    %v499 = vsel %vm498, %v491, %v495
    %v500 = vand.u32 2147483647, %v490
    %vm501 = vcmp.eq.f32.partialorder %v500, 8.507059e+37
    %v502 = vand.u32 %v490, 2147483648
    %v503 = vor.u32 1.1754944e-38, %v502
    %v504 = vsel %vm501, %v503, %v499
    %v505 = vmul.f32 %v405, %v504
    %v506 = vrcp.pop 2.828427
    %v507 = vmul.f32 2.828427, %v506
    %v508 = vsub.f32 1.0, %v507
    %v509 = vmul.f32 %v506, %v508
    %v510 = vadd.f32 %v506, %v509
    %vm511 = vweird.f32 %v506
    %v512 = vsel %vm511, %v506, %v510
    %v513 = vmul.f32 %v411, %v512
    %v514 = vsub.f32 %v505, %v513
    %v515 = vmul.f32 %v514, %v514
    %v516 = vsel %vm238, %v515, 0.0
    %517 = vadd.xlane.f32.xlu0 %v516
    %v518 = vpop.xlane.xlu0 %517
    %v519 = vrot.slane %v518, 4
    %v520 = vadd.f32 %v518, %v519
    %v521 = vrot.slane %v520, 2
    %v522 = vadd.f32 %v520, %v521
    %v523 = vrot.slane %v522, 1
    %v524 = vadd.f32 %v522, %v523
    %s525 = vtos %v524
    %s526 = sadd.f32 %s525, 1e-09
    %v527 = vstv %s526
    %v528 = vrsqrt.pop %v527
    %v529 = vmul.f32 %v528, %v527
    %v530 = vmul.f32 %v529, %v528
    %v531 = vmul.f32 0.5, %v530
    %v532 = vsub.f32 1.5, %v531
    %v533 = vmul.f32 %v528, %v532
    %v534 = vmul.f32 %v527, %v533
    %vm535 = vcmp.eq.f32.partialorder %v527, inf
    %v536 = vsel %vm535, %v527, %v534
    %vm537 = vcmp.eq.f32.partialorder %v527, 0.0
    %v538 = vand.u32 %v527, 2147483648
    %v539 = vsel %vm537, %v538, %v536
    %s540 = vtos %v539
    %v542 = vsel %vm208, %v342, 0
    %544 = vmatpush.msra.mxu0 0.0
    %545 = vmatpush.msra.mxu0 0.0
    %546 = vmatpush.msra.mxu0 0.0
    %547 = vmatpush.msra.mxu0 0.0
    %548 = vmatpush.msra.mxu0 0.0
    %549 = vmatpush.msra.mxu0 0.0
    %550 = vmatpush.msra.mxu0 0.0
    %551 = vmatpush.msra.mxu0 0.0
    %552 = vmatpush.msra.mxu0 0.0
    %553 = vmatpush.msra.mxu0 0.0
    %554 = vmatpush.msra.mxu0 0.0
    %555 = vmatpush.msra.mxu0 0.0
    %556 = vmatpush.msra.mxu0 %v78
    %557 = vmatpush.msra.mxu0 %v77
    %558 = vmatpush.msra.mxu0 %v76
    %559 = vmatpush.msra.mxu0 %v75
    %560 = vmatmul.f32.gmra.mxu0 %v542
    %v561 = vpop.f32.mrf.mxu0
    %v562 = vadd.f32 0.0, %v561
    %563 = vdwg.mxu0
    %565 = vrot.lane.b32.xlu0 %v562, 96
    %v566 = vpop.permute.xlu0 %565
    %v569 = vsel %vm238, %v385, 0
    %571 = vmatpush.msra.mxu0 0.0
    %572 = vmatpush.msra.mxu0 0.0
    %573 = vmatpush.msra.mxu0 0.0
    %574 = vmatpush.msra.mxu0 0.0
    %575 = vmatpush.msra.mxu0 0.0
    %576 = vmatpush.msra.mxu0 0.0
    %577 = vmatpush.msra.mxu0 0.0
    %578 = vmatpush.msra.mxu0 0.0
    %579 = vmatpush.msra.mxu0 0.0
    %580 = vmatpush.msra.mxu0 0.0
    %581 = vmatpush.msra.mxu0 0.0
    %582 = vmatpush.msra.mxu0 0.0
    %583 = vmatpush.msra.mxu0 0.0
    %584 = vmatpush.msra.mxu0 0.0
    %585 = vmatpush.msra.mxu0 0.0
    %586 = vmatpush.msra.mxu0 %v562
    %587 = vmatmul.f32.gmra.mxu0 %v569
    %v588 = vpop.f32.mrf.mxu0
    %v589 = vadd.f32 %v566, %v588
    %590 = vdwg.mxu0
    %v592 = vperm.slane %v79, 0
    %v594 = vadd.f32 %v589, %v592
    %v595 = vmax.f32 %v594, 0.0
    %v597 = vperm.slane %v84, 0
    %v600 = vsel %vm208, %v595, 0
    %602 = vmatpush.msra.mxu0 0.0
    %603 = vmatpush.msra.mxu0 0.0
    %604 = vmatpush.msra.mxu0 0.0
    %605 = vmatpush.msra.mxu0 0.0
    %606 = vmatpush.msra.mxu0 0.0
    %607 = vmatpush.msra.mxu0 0.0
    %608 = vmatpush.msra.mxu0 0.0
    %609 = vmatpush.msra.mxu0 0.0
    %610 = vmatpush.msra.mxu0 0.0
    %611 = vmatpush.msra.mxu0 0.0
    %612 = vmatpush.msra.mxu0 0.0
    %613 = vmatpush.msra.mxu0 0.0
    %614 = vmatpush.msra.mxu0 %v83
    %615 = vmatpush.msra.mxu0 %v82
    %616 = vmatpush.msra.mxu0 %v81
    %617 = vmatpush.msra.mxu0 %v80
    %618 = vmatmul.f32.gmra.mxu0 %v600
    %v619 = vpop.f32.mrf.mxu0
    %v620 = vadd.f32 %v597, %v619
    %621 = vdwg.mxu0
    %v622 = vsel %vm99, %v620, -inf
    %623 = vmax.xlane.f32.xlu0 %v622
    %v624 = vpop.xlane.xlu0 %623
    %v625 = vsub.f32 %v620, %v624
    %v626 = vmul.f32 %v625, 1.442695
    %v627 = vpow.pop %v626
    %v628 = vsel %vm99, %v627, 0.0
    %629 = vadd.xlane.f32.xlu0 %v628
    %v630 = vpop.xlane.xlu0 %629
    %v631 = vrcp.pop %v630
    %v632 = vmul.f32 %v630, %v631
    %v633 = vsub.f32 1.0, %v632
    %v634 = vmul.f32 %v631, %v633
    %v635 = vadd.f32 %v631, %v634
    %vm636 = vweird.f32 %v630
    %vm637 = vweird.f32 %v631
    %vm638 = vmor %vm636, %vm637
    %v639 = vsel %vm638, %v631, %v635
    %v640 = vand.u32 2147483647, %v630
    %vm641 = vcmp.eq.f32.partialorder %v640, 8.507059e+37
    %v642 = vand.u32 %v630, 2147483648
    %v643 = vor.u32 1.1754944e-38, %v642
    %v644 = vsel %vm641, %v643, %v639
    %v645 = vmul.f32 %v627, %v644
    %646 = vxpose.xlu0.b32.start [1/16] %v645, 128
    %647 = vxpose.xlu0.b32.cont [2/16] 0.0, 128
    %648 = vxpose.xlu0.b32.cont [3/16] 0.0, 128
    %649 = vxpose.xlu0.b32.cont [4/16] 0.0, 128
    %650 = vxpose.xlu0.b32.cont [5/16] 0.0, 128
    %651 = vxpose.xlu0.b32.cont [6/16] 0.0, 128
    %652 = vxpose.xlu0.b32.cont [7/16] 0.0, 128
    %653 = vxpose.xlu0.b32.cont [8/16] 0.0, 128
    %654 = vxpose.xlu0.b32.cont [9/16] 0.0, 128
    %655 = vxpose.xlu0.b32.cont [10/16] 0.0, 128
    %656 = vxpose.xlu0.b32.cont [11/16] 0.0, 128
    %657 = vxpose.xlu0.b32.cont [12/16] 0.0, 128
    %658 = vxpose.xlu0.b32.cont [13/16] 0.0, 128
    %659 = vxpose.xlu0.b32.cont [14/16] 0.0, 128
    %660 = vxpose.xlu0.b32.cont [15/16] 0.0, 128
    %661 = vxpose.xlu0.b32.end [16/16] 0.0, 128
    %v662 = vpop.trf.xlu0
    %v663 = vpop.trf.xlu0
    %v664 = vpop.trf.xlu0
    %v665 = vpop.trf.xlu0
    %v666 = vpop.trf.xlu0
    %v667 = vpop.trf.xlu0
    %v668 = vpop.trf.xlu0
    %v669 = vpop.trf.xlu0
    %v670 = vpop.trf.xlu0
    %v671 = vpop.trf.xlu0
    %v672 = vpop.trf.xlu0
    %v673 = vpop.trf.xlu0
    %v674 = vpop.trf.xlu0
    %v675 = vpop.trf.xlu0
    %v676 = vpop.trf.xlu0
    %v677 = vpop.trf.xlu0
    %v679 = vsel %vm238, %v662, 0
    %681 = vmatpush.msra.mxu0 0.0
    %682 = vmatpush.msra.mxu0 0.0
    %683 = vmatpush.msra.mxu0 0.0
    %684 = vmatpush.msra.mxu0 0.0
    %685 = vmatpush.msra.mxu0 0.0
    %686 = vmatpush.msra.mxu0 0.0
    %687 = vmatpush.msra.mxu0 0.0
    %688 = vmatpush.msra.mxu0 0.0
    %689 = vmatpush.msra.mxu0 0.0
    %690 = vmatpush.msra.mxu0 0.0
    %691 = vmatpush.msra.mxu0 0.0
    %692 = vmatpush.msra.mxu0 0.0
    %693 = vmatpush.msra.mxu0 0.0
    %694 = vmatpush.msra.mxu0 0.0
    %695 = vmatpush.msra.mxu0 0.0
    %696 = vmatpush.msra.mxu0 %v595
    %697 = vmatmul.f32.gmra.mxu0 %v679
    %v698 = vpop.f32.mrf.mxu0
    %v699 = vadd.f32 0.0, %v698
    %700 = vdwg.mxu0
    %701 = vmatpush.msra.mxu0 0.0
    %702 = vmatpush.msra.mxu0 0.0
    %703 = vmatpush.msra.mxu0 0.0
    %704 = vmatpush.msra.mxu0 0.0
    %705 = vmatpush.msra.mxu0 0.0
    %706 = vmatpush.msra.mxu0 0.0
    %707 = vmatpush.msra.mxu0 0.0
    %708 = vmatpush.msra.mxu0 0.0
    %709 = vmatpush.msra.mxu0 0.0
    %710 = vmatpush.msra.mxu0 0.0
    %711 = vmatpush.msra.mxu0 0.0
    %712 = vmatpush.msra.mxu0 0.0
    %713 = vmatpush.msra.mxu0 0.0
    %714 = vmatpush.msra.mxu0 0.0
    %715 = vmatpush.msra.mxu0 0.0
    %716 = vmatpush.msra.mxu0 %v385
    %717 = vmatmul.f32.gmra.mxu0 %v679
    %v718 = vpop.f32.mrf.mxu0
    %v719 = vadd.f32 0.0, %v718
    %720 = vdwg.mxu0
    %v722 = vsel %vm238, %v719, 0
    %724 = vmatpush.msra.mxu0 0.0
    %725 = vmatpush.msra.mxu0 0.0
    %726 = vmatpush.msra.mxu0 0.0
    %727 = vmatpush.msra.mxu0 0.0
    %728 = vmatpush.msra.mxu0 0.0
    %729 = vmatpush.msra.mxu0 0.0
    %730 = vmatpush.msra.mxu0 0.0
    %731 = vmatpush.msra.mxu0 0.0
    %732 = vmatpush.msra.mxu0 0.0
    %733 = vmatpush.msra.mxu0 0.0
    %734 = vmatpush.msra.mxu0 0.0
    %735 = vmatpush.msra.mxu0 0.0
    %736 = vmatpush.msra.mxu0 0.0
    %737 = vmatpush.msra.mxu0 0.0
    %738 = vmatpush.msra.mxu0 0.0
    %739 = vmatpush.msra.mxu0 %v645
    %740 = vmatmul.f32.gmra.mxu0 %v722
    %v741 = vpop.f32.mrf.mxu0
    %v742 = vadd.f32 0.0, %v741
    %743 = vdwg.mxu0
    %744 = vmatpush.msra.mxu0 0.0
    %745 = vmatpush.msra.mxu0 0.0
    %746 = vmatpush.msra.mxu0 0.0
    %747 = vmatpush.msra.mxu0 0.0
    %748 = vmatpush.msra.mxu0 0.0
    %749 = vmatpush.msra.mxu0 0.0
    %750 = vmatpush.msra.mxu0 0.0
    %751 = vmatpush.msra.mxu0 0.0
    %752 = vmatpush.msra.mxu0 0.0
    %753 = vmatpush.msra.mxu0 0.0
    %754 = vmatpush.msra.mxu0 0.0
    %755 = vmatpush.msra.mxu0 0.0
    %756 = vmatpush.msra.mxu0 0.0
    %757 = vmatpush.msra.mxu0 0.0
    %758 = vmatpush.msra.mxu0 0.0
    %759 = vmatpush.msra.mxu0 %v645
    %760 = vmatmul.f32.gmra.mxu0 %v679
    %v761 = vpop.f32.mrf.mxu0
    %v762 = vadd.f32 0.0, %v761
    %763 = vdwg.mxu0
    %v764 = vsel %vm238, %v385, 0.0
    %765 = vadd.xlane.f32.xlu0 %v764
    %v766 = vpop.xlane.xlu0 %765
    %v767 = vmul.f32 %v742, %v411
    %vm768 = vcmask 27648
    %v769 = vsel %vm768, %v767, 0.0
    %770 = vadd.xlane.f32.xlu0 %v769
    %v771 = vpop.xlane.xlu0 %770
    %v772 = vrot.slane %v771, 4
    %v773 = vadd.f32 %v771, %v772
    %v774 = vrot.slane %v773, 2
    %v775 = vadd.f32 %v773, %v774
    %v776 = vrot.slane %v775, 1
    %v777 = vadd.f32 %v775, %v776
    %s778 = vtos %v777
    %v779 = vmul.f32 %v766, %v645
    %v780 = vmul.f32 %v779, %v645
    %v781 = vsel %vm99, %v780, 0.0
    %782 = vadd.xlane.f32.xlu0 %v781
    %v783 = vpop.xlane.xlu0 %782
    %v784 = vrot.slane %v783, 4
    %v785 = vadd.f32 %v783, %v784
    %v786 = vrot.slane %v785, 2
    %v787 = vadd.f32 %v785, %v786
    %v788 = vrot.slane %v787, 1
    %v789 = vadd.f32 %v787, %v788
    %s790 = vtos %v789
    %s791 = sadd.f32 %s790, 1e-09
    %v792 = vstv %s791
    %v793 = vrcp.pop %v792
    %v794 = vmul.f32 %v792, %v793
    %v795 = vsub.f32 1.0, %v794
    %v796 = vmul.f32 %v793, %v795
    %v797 = vadd.f32 %v793, %v796
    %vm798 = vweird.f32 %v792
    %vm799 = vweird.f32 %v793
    %vm800 = vmor %vm798, %vm799
    %v801 = vsel %vm800, %v793, %v797
    %v802 = vand.u32 2147483647, %v792
    %vm803 = vcmp.eq.f32.partialorder %v802, 8.507059e+37
    %v804 = vand.u32 %v792, 2147483648
    %v805 = vor.u32 1.1754944e-38, %v804
    %v806 = vsel %vm803, %v805, %v801
    %s807 = vtos %v806
    %s808 = smul.f32 %s778, %s807
    %s809 = ssub.f32 1.0, %s808
    %v810 = vmul.f32 %v762, %v762
    %v811 = vsel %vm768, %v810, 0.0
    %812 = vadd.xlane.f32.xlu0 %v811
    %v813 = vpop.xlane.xlu0 %812
    %v814 = vrot.slane %v813, 4
    %v815 = vadd.f32 %v813, %v814
    %v816 = vrot.slane %v815, 2
    %v817 = vadd.f32 %v815, %v816
    %v818 = vrot.slane %v817, 1
    %v819 = vadd.f32 %v817, %v818
    %s820 = vtos %v819
    %s821 = sadd.f32 %s820, 1e-09
    %v822 = vstv %s821
    %v823 = vrsqrt.pop %v822
    %v824 = vmul.f32 %v823, %v822
    %v825 = vmul.f32 %v824, %v823
    %v826 = vmul.f32 0.5, %v825
    %v827 = vsub.f32 1.5, %v826
    %v828 = vmul.f32 %v823, %v827
    %v829 = vmul.f32 %v822, %v828
    %vm830 = vcmp.eq.f32.partialorder %v822, inf
    %v831 = vsel %vm830, %v822, %v829
    %vm832 = vcmp.eq.f32.partialorder %v822, 0.0
    %v833 = vand.u32 %v822, 2147483648
    %v834 = vsel %vm832, %v833, %v831
    %s835 = vtos %v834
    %v836 = vstv %s835
    %v837 = vrcp.pop %v836
    %v838 = vmul.f32 %v836, %v837
    %v839 = vsub.f32 1.0, %v838
    %v840 = vmul.f32 %v837, %v839
    %v841 = vadd.f32 %v837, %v840
    %vm842 = vweird.f32 %v836
    %vm843 = vweird.f32 %v837
    %vm844 = vmor %vm842, %vm843
    %v845 = vsel %vm844, %v837, %v841
    %v846 = vand.u32 2147483647, %v836
    %vm847 = vcmp.eq.f32.partialorder %v846, 8.507059e+37
    %v848 = vand.u32 %v836, 2147483648
    %v849 = vor.u32 1.1754944e-38, %v848
    %v850 = vsel %vm847, %v849, %v845
    %v851 = vmul.f32 %v762, %v850
    %v852 = vrcp.pop 2.0
    %v853 = vmul.f32 2.0, %v852
    %v854 = vsub.f32 1.0, %v853
    %v855 = vmul.f32 %v852, %v854
    %v856 = vadd.f32 %v852, %v855
    %vm857 = vweird.f32 %v852
    %v858 = vsel %vm857, %v852, %v856
    %v859 = vmul.f32 %v411, %v858
    %v860 = vsub.f32 %v851, %v859
    %v861 = vmul.f32 %v860, %v860
    %v862 = vsel %vm768, %v861, 0.0
    %863 = vadd.xlane.f32.xlu0 %v862
    %v864 = vpop.xlane.xlu0 %863
    %v865 = vrot.slane %v864, 4
    %v866 = vadd.f32 %v864, %v865
    %v867 = vrot.slane %v866, 2
    %v868 = vadd.f32 %v866, %v867
    %v869 = vrot.slane %v868, 1
    %v870 = vadd.f32 %v868, %v869
    %s871 = vtos %v870
    %s872 = sadd.f32 %s871, 1e-09
    %v873 = vstv %s872
    %v874 = vrsqrt.pop %v873
    %v875 = vmul.f32 %v874, %v873
    %v876 = vmul.f32 %v875, %v874
    %v877 = vmul.f32 0.5, %v876
    %v878 = vsub.f32 1.5, %v877
    %v879 = vmul.f32 %v874, %v878
    %v880 = vmul.f32 %v873, %v879
    %vm881 = vcmp.eq.f32.partialorder %v873, inf
    %v882 = vsel %vm881, %v873, %v880
    %vm883 = vcmp.eq.f32.partialorder %v873, 0.0
    %v884 = vand.u32 %v873, 2147483648
    %v885 = vsel %vm883, %v884, %v882
    %s886 = vtos %v885
    %v888 = vsel %vm208, %v699, 0
    %890 = vmatpush.msra.mxu0 0.0
    %891 = vmatpush.msra.mxu0 0.0
    %892 = vmatpush.msra.mxu0 0.0
    %893 = vmatpush.msra.mxu0 0.0
    %894 = vmatpush.msra.mxu0 0.0
    %895 = vmatpush.msra.mxu0 0.0
    %896 = vmatpush.msra.mxu0 0.0
    %897 = vmatpush.msra.mxu0 0.0
    %898 = vmatpush.msra.mxu0 0.0
    %899 = vmatpush.msra.mxu0 0.0
    %900 = vmatpush.msra.mxu0 0.0
    %901 = vmatpush.msra.mxu0 0.0
    %902 = vmatpush.msra.mxu0 %v88
    %903 = vmatpush.msra.mxu0 %v87
    %904 = vmatpush.msra.mxu0 %v86
    %905 = vmatpush.msra.mxu0 %v85
    %906 = vmatmul.f32.gmra.mxu0 %v888
    %v907 = vpop.f32.mrf.mxu0
    %v908 = vadd.f32 0.0, %v907
    %909 = vdwg.mxu0
    %911 = vrot.lane.b32.xlu0 %v908, 96
    %v912 = vpop.permute.xlu0 %911
    %v915 = vsel %vm99, %v742, 0
    %v917 = vsel %vm112, %v908, 0
    %919 = vmatpush.msra.mxu0 0.0
    %920 = vmatpush.msra.mxu0 0.0
    %921 = vmatpush.msra.mxu0 0.0
    %922 = vmatpush.msra.mxu0 0.0
    %923 = vmatpush.msra.mxu0 0.0
    %924 = vmatpush.msra.mxu0 0.0
    %925 = vmatpush.msra.mxu0 0.0
    %926 = vmatpush.msra.mxu0 0.0
    %927 = vmatpush.msra.mxu0 0.0
    %928 = vmatpush.msra.mxu0 0.0
    %929 = vmatpush.msra.mxu0 0.0
    %930 = vmatpush.msra.mxu0 0.0
    %931 = vmatpush.msra.mxu0 0.0
    %932 = vmatpush.msra.mxu0 0.0
    %933 = vmatpush.msra.mxu0 0.0
    %934 = vmatpush.msra.mxu0 %v917
    %935 = vmatmul.f32.gmra.mxu0 %v915
    %v936 = vpop.f32.mrf.mxu0
    %v937 = vadd.f32 %v912, %v936
    %938 = vdwg.mxu0
    %v940 = vperm.slane %v89, 0
    %v942 = vadd.f32 %v937, %v940
    %v943 = vmax.f32 %v942, 0.0
    %v945 = vsel %vm99, 0.25, 0
    %v948 = vsel %vm112, %v943, 0
    %950 = vmatpush.msra.mxu0 0.0
    %951 = vmatpush.msra.mxu0 0.0
    %952 = vmatpush.msra.mxu0 0.0
    %953 = vmatpush.msra.mxu0 0.0
    %954 = vmatpush.msra.mxu0 0.0
    %955 = vmatpush.msra.mxu0 0.0
    %956 = vmatpush.msra.mxu0 0.0
    %957 = vmatpush.msra.mxu0 0.0
    %958 = vmatpush.msra.mxu0 0.0
    %959 = vmatpush.msra.mxu0 0.0
    %960 = vmatpush.msra.mxu0 0.0
    %961 = vmatpush.msra.mxu0 0.0
    %962 = vmatpush.msra.mxu0 0.0
    %963 = vmatpush.msra.mxu0 0.0
    %964 = vmatpush.msra.mxu0 0.0
    %965 = vmatpush.msra.mxu0 %v948
    %966 = vmatmul.f32.gmra.mxu0 %v945
    %v967 = vpop.f32.mrf.mxu0
    %v968 = vadd.f32 0.0, %v967
    %969 = vdwg.mxu0
    %v971 = vsel %vm208, %v968, 0
    %973 = vmatpush.msra.mxu0 0.0
    %974 = vmatpush.msra.mxu0 0.0
    %975 = vmatpush.msra.mxu0 0.0
    %976 = vmatpush.msra.mxu0 0.0
    %977 = vmatpush.msra.mxu0 0.0
    %978 = vmatpush.msra.mxu0 0.0
    %979 = vmatpush.msra.mxu0 0.0
    %980 = vmatpush.msra.mxu0 0.0
    %981 = vmatpush.msra.mxu0 0.0
    %982 = vmatpush.msra.mxu0 0.0
    %983 = vmatpush.msra.mxu0 0.0
    %984 = vmatpush.msra.mxu0 0.0
    %985 = vmatpush.msra.mxu0 %v93
    %986 = vmatpush.msra.mxu0 %v92
    %987 = vmatpush.msra.mxu0 %v91
    %988 = vmatpush.msra.mxu0 %v90
    %989 = vmatmul.f32.gmra.mxu0 %v971
    %v990 = vpop.f32.mrf.mxu0
    %v991 = vadd.f32 %v94, %v990
    %992 = vdwg.mxu0
    %vm993 = vcmask 8192
    %994 = vst.msk [vmem:[#allocation5] sm:$0x1] %vm993, %v991
    %s995 = sadd.f32 %s463, 0.0
    %s996 = sadd.f32 %s995, %s809
    %s997 = sadd.f32 %s540, 0.0
    %s998 = sadd.f32 %s997, %s886
    %s999 = scalar_lea.vmem %s2, 16
    %v1000 = vld [vmem:[%s999] sm:$0xff]
    %v1001 = vld [vmem:[%s999 + $0x8] sm:$0xff]
    %s1002 = sld [smem:[#allocation2 + $0x1]]
    %v1003 = vstv %s1002
    %vm1004 = vcmp.lt.s32.totalorder %v146, %v1003
    %vm1005 = vcmp.lt.s32.totalorder %v147, %v1003
    %v1006 = vsel %vm1004, 1, 0
    %v1007 = vsel %vm1005, 1, 0
    %v1008 = vcvt.s32.f32 %v1006
    %v1009 = vcvt.s32.f32 %v1007
    %1012 = vrot.lane.b32.xlu0 %v140, 96
    %v1013 = vpop.permute.xlu0 %1012
    %1014 = vrot.lane.b32.xlu0 %v143, 96
    %v1015 = vpop.permute.xlu0 %1014
    %v1019 = vsel %vm166, %v1000, 0
    %v1022 = vsel %vm166, %v1001, 0
    %1024 = vmatpush.msra.mxu0 0.0
    %1025 = vmatpush.msra.mxu0 0.0
    %1026 = vmatpush.msra.mxu0 0.0
    %1027 = vmatpush.msra.mxu0 0.0
    %1028 = vmatpush.msra.mxu0 0.0
    %1029 = vmatpush.msra.mxu0 0.0
    %1030 = vmatpush.msra.mxu0 0.0
    %1031 = vmatpush.msra.mxu0 0.0
    %1032 = vmatpush.msra.mxu0 0.0
    %1033 = vmatpush.msra.mxu0 0.0
    %1034 = vmatpush.msra.mxu0 0.0
    %1035 = vmatpush.msra.mxu0 0.0
    %1036 = vmatpush.msra.mxu0 0.0
    %1037 = vmatpush.msra.mxu0 0.0
    %1038 = vmatpush.msra.mxu0 %v143
    %1039 = vmatpush.msra.mxu0 %v140
    %1040 = vmatmul.f32.gmra.mxu0 %v1019
    %v1041 = vpop.f32.mrf.mxu0
    %v1042 = vadd.f32 %v1013, %v1041
    %1043 = vmatmul.f32.gmra.mxu0 %v1022
    %v1044 = vpop.f32.mrf.mxu0
    %v1045 = vadd.f32 %v1015, %v1044
    %1046 = vdwg.mxu0
    %v1047 = vadd.f32 %v1042, %v197
    %v1048 = vadd.f32 %v1045, %v197
    %v1049 = vmax.f32 %v1047, 0.0
    %v1050 = vmax.f32 %v1048, 0.0
    %v1051 = vmul.f32 %v1049, %v1008
    %v1052 = vmul.f32 %v1050, %v1009
    %v1054 = vsel %vm208, %v1051, 0
    %v1057 = vsel %vm208, %v1052, 0
    %1059 = vmatpush.msra.mxu0 0.0
    %1060 = vmatpush.msra.mxu0 0.0
    %1061 = vmatpush.msra.mxu0 0.0
    %1062 = vmatpush.msra.mxu0 0.0
    %1063 = vmatpush.msra.mxu0 0.0
    %1064 = vmatpush.msra.mxu0 0.0
    %1065 = vmatpush.msra.mxu0 0.0
    %1066 = vmatpush.msra.mxu0 0.0
    %1067 = vmatpush.msra.mxu0 0.0
    %1068 = vmatpush.msra.mxu0 0.0
    %1069 = vmatpush.msra.mxu0 0.0
    %1070 = vmatpush.msra.mxu0 0.0
    %1071 = vmatpush.msra.mxu0 %v73
    %1072 = vmatpush.msra.mxu0 %v72
    %1073 = vmatpush.msra.mxu0 %v71
    %1074 = vmatpush.msra.mxu0 %v70
    %1075 = vmatmul.f32.gmra.mxu0 %v1054
    %v1076 = vpop.f32.mrf.mxu0
    %v1077 = vadd.f32 %v206, %v1076
    %1078 = vmatmul.f32.gmra.mxu0 %v1057
    %v1079 = vpop.f32.mrf.mxu0
    %v1080 = vadd.f32 %v206, %v1079
    %1081 = vdwg.mxu0
    %v1082 = vsel %vm238, %v1077, -inf
    %1083 = vmax.xlane.f32.xlu0 %v1082
    %v1084 = vpop.xlane.xlu0 %1083
    %v1085 = vsel %vm238, %v1080, -inf
    %1086 = vmax.xlane.f32.xlu0 %v1085
    %v1087 = vpop.xlane.xlu0 %1086
    %v1088 = vsub.f32 %v1077, %v1084
    %v1089 = vsub.f32 %v1080, %v1087
    %v1090 = vmul.f32 %v1088, 1.442695
    %v1091 = vpow.pop %v1090
    %v1092 = vmul.f32 %v1089, 1.442695
    %v1093 = vpow.pop %v1092
    %v1094 = vsel %vm238, %v1091, 0.0
    %1095 = vadd.xlane.f32.xlu0 %v1094
    %v1096 = vpop.xlane.xlu0 %1095
    %v1097 = vsel %vm238, %v1093, 0.0
    %1098 = vadd.xlane.f32.xlu0 %v1097
    %v1099 = vpop.xlane.xlu0 %1098
    %v1100 = vrcp.pop %v1096
    %v1101 = vmul.f32 %v1096, %v1100
    %v1102 = vsub.f32 1.0, %v1101
    %v1103 = vmul.f32 %v1100, %v1102
    %v1104 = vadd.f32 %v1100, %v1103
    %vm1105 = vweird.f32 %v1096
    %vm1106 = vweird.f32 %v1100
    %vm1107 = vmor %vm1105, %vm1106
    %v1108 = vsel %vm1107, %v1100, %v1104
    %v1109 = vand.u32 2147483647, %v1096
    %vm1110 = vcmp.eq.f32.partialorder %v1109, 8.507059e+37
    %v1111 = vand.u32 %v1096, 2147483648
    %v1112 = vor.u32 1.1754944e-38, %v1111
    %v1113 = vsel %vm1110, %v1112, %v1108
    %v1114 = vmul.f32 %v1091, %v1113
    %v1115 = vrcp.pop %v1099
    %v1116 = vmul.f32 %v1099, %v1115
    %v1117 = vsub.f32 1.0, %v1116
    %v1118 = vmul.f32 %v1115, %v1117
    %v1119 = vadd.f32 %v1115, %v1118
    %vm1120 = vweird.f32 %v1099
    %vm1121 = vweird.f32 %v1115
    %vm1122 = vmor %vm1120, %vm1121
    %v1123 = vsel %vm1122, %v1115, %v1119
    %v1124 = vand.u32 2147483647, %v1099
    %vm1125 = vcmp.eq.f32.partialorder %v1124, 8.507059e+37
    %v1126 = vand.u32 %v1099, 2147483648
    %v1127 = vor.u32 1.1754944e-38, %v1126
    %v1128 = vsel %vm1125, %v1127, %v1123
    %v1129 = vmul.f32 %v1093, %v1128
    %v1130 = vmul.f32 %v1114, %v1008
    %v1131 = vmul.f32 %v1129, %v1009
    %1132 = vxpose.xlu0.b32.start [1/16] %v1130, 128
    %1133 = vxpose.xlu0.b32.cont [2/16] %v1131, 128
    %1134 = vxpose.xlu0.b32.cont [3/16] 0.0, 128
    %1135 = vxpose.xlu0.b32.cont [4/16] 0.0, 128
    %1136 = vxpose.xlu0.b32.cont [5/16] 0.0, 128
    %1137 = vxpose.xlu0.b32.cont [6/16] 0.0, 128
    %1138 = vxpose.xlu0.b32.cont [7/16] 0.0, 128
    %1139 = vxpose.xlu0.b32.cont [8/16] 0.0, 128
    %1140 = vxpose.xlu0.b32.cont [9/16] 0.0, 128
    %1141 = vxpose.xlu0.b32.cont [10/16] 0.0, 128
    %1142 = vxpose.xlu0.b32.cont [11/16] 0.0, 128
    %1143 = vxpose.xlu0.b32.cont [12/16] 0.0, 128
    %1144 = vxpose.xlu0.b32.cont [13/16] 0.0, 128
    %1145 = vxpose.xlu0.b32.cont [14/16] 0.0, 128
    %1146 = vxpose.xlu0.b32.cont [15/16] 0.0, 128
    %1147 = vxpose.xlu0.b32.end [16/16] 0.0, 128
    %v1148 = vpop.trf.xlu0
    %v1149 = vpop.trf.xlu0
    %v1150 = vpop.trf.xlu0
    %v1151 = vpop.trf.xlu0
    %v1152 = vpop.trf.xlu0
    %v1153 = vpop.trf.xlu0
    %v1154 = vpop.trf.xlu0
    %v1155 = vpop.trf.xlu0
    %v1156 = vpop.trf.xlu0
    %v1157 = vpop.trf.xlu0
    %v1158 = vpop.trf.xlu0
    %v1159 = vpop.trf.xlu0
    %v1160 = vpop.trf.xlu0
    %v1161 = vpop.trf.xlu0
    %v1162 = vpop.trf.xlu0
    %v1163 = vpop.trf.xlu0
    %v1165 = vsel %vm166, %v1148, 0
    %1167 = vmatpush.msra.mxu0 0.0
    %1168 = vmatpush.msra.mxu0 0.0
    %1169 = vmatpush.msra.mxu0 0.0
    %1170 = vmatpush.msra.mxu0 0.0
    %1171 = vmatpush.msra.mxu0 0.0
    %1172 = vmatpush.msra.mxu0 0.0
    %1173 = vmatpush.msra.mxu0 0.0
    %1174 = vmatpush.msra.mxu0 0.0
    %1175 = vmatpush.msra.mxu0 0.0
    %1176 = vmatpush.msra.mxu0 0.0
    %1177 = vmatpush.msra.mxu0 0.0
    %1178 = vmatpush.msra.mxu0 0.0
    %1179 = vmatpush.msra.mxu0 0.0
    %1180 = vmatpush.msra.mxu0 0.0
    %1181 = vmatpush.msra.mxu0 %v1052
    %1182 = vmatpush.msra.mxu0 %v1051
    %1183 = vmatmul.f32.gmra.mxu0 %v1165
    %v1184 = vpop.f32.mrf.mxu0
    %v1185 = vadd.f32 0.0, %v1184
    %1186 = vdwg.mxu0
    %1187 = vmatpush.msra.mxu0 0.0
    %1188 = vmatpush.msra.mxu0 0.0
    %1189 = vmatpush.msra.mxu0 0.0
    %1190 = vmatpush.msra.mxu0 0.0
    %1191 = vmatpush.msra.mxu0 0.0
    %1192 = vmatpush.msra.mxu0 0.0
    %1193 = vmatpush.msra.mxu0 0.0
    %1194 = vmatpush.msra.mxu0 0.0
    %1195 = vmatpush.msra.mxu0 0.0
    %1196 = vmatpush.msra.mxu0 0.0
    %1197 = vmatpush.msra.mxu0 0.0
    %1198 = vmatpush.msra.mxu0 0.0
    %1199 = vmatpush.msra.mxu0 0.0
    %1200 = vmatpush.msra.mxu0 0.0
    %1201 = vmatpush.msra.mxu0 %v1001
    %1202 = vmatpush.msra.mxu0 %v1000
    %1203 = vmatmul.f32.gmra.mxu0 %v1165
    %v1204 = vpop.f32.mrf.mxu0
    %v1205 = vadd.f32 0.0, %v1204
    %1206 = vdwg.mxu0
    %v1208 = vsel %vm166, %v1205, 0
    %1210 = vmatpush.msra.mxu0 0.0
    %1211 = vmatpush.msra.mxu0 0.0
    %1212 = vmatpush.msra.mxu0 0.0
    %1213 = vmatpush.msra.mxu0 0.0
    %1214 = vmatpush.msra.mxu0 0.0
    %1215 = vmatpush.msra.mxu0 0.0
    %1216 = vmatpush.msra.mxu0 0.0
    %1217 = vmatpush.msra.mxu0 0.0
    %1218 = vmatpush.msra.mxu0 0.0
    %1219 = vmatpush.msra.mxu0 0.0
    %1220 = vmatpush.msra.mxu0 0.0
    %1221 = vmatpush.msra.mxu0 0.0
    %1222 = vmatpush.msra.mxu0 0.0
    %1223 = vmatpush.msra.mxu0 0.0
    %1224 = vmatpush.msra.mxu0 %v1131
    %1225 = vmatpush.msra.mxu0 %v1130
    %1226 = vmatmul.f32.gmra.mxu0 %v1208
    %v1227 = vpop.f32.mrf.mxu0
    %v1228 = vadd.f32 0.0, %v1227
    %1229 = vdwg.mxu0
    %1230 = vmatpush.msra.mxu0 0.0
    %1231 = vmatpush.msra.mxu0 0.0
    %1232 = vmatpush.msra.mxu0 0.0
    %1233 = vmatpush.msra.mxu0 0.0
    %1234 = vmatpush.msra.mxu0 0.0
    %1235 = vmatpush.msra.mxu0 0.0
    %1236 = vmatpush.msra.mxu0 0.0
    %1237 = vmatpush.msra.mxu0 0.0
    %1238 = vmatpush.msra.mxu0 0.0
    %1239 = vmatpush.msra.mxu0 0.0
    %1240 = vmatpush.msra.mxu0 0.0
    %1241 = vmatpush.msra.mxu0 0.0
    %1242 = vmatpush.msra.mxu0 0.0
    %1243 = vmatpush.msra.mxu0 0.0
    %1244 = vmatpush.msra.mxu0 %v1131
    %1245 = vmatpush.msra.mxu0 %v1130
    %1246 = vmatmul.f32.gmra.mxu0 %v1165
    %v1247 = vpop.f32.mrf.mxu0
    %v1248 = vadd.f32 0.0, %v1247
    %1249 = vdwg.mxu0
    %v1250 = vsel %vm166, %v1000, 0.0
    %1251 = vadd.xlane.f32.xlu0 %v1250
    %v1252 = vpop.xlane.xlu0 %1251
    %v1253 = vsel %vm166, %v1001, 0.0
    %1254 = vadd.xlane.f32.xlu0 %v1253
    %v1255 = vpop.xlane.xlu0 %1254
    %v1256 = vmul.f32 %v1228, %v411
    %v1257 = vsel %vm238, %v1256, 0.0
    %1258 = vadd.xlane.f32.xlu0 %v1257
    %v1259 = vpop.xlane.xlu0 %1258
    %v1260 = vrot.slane %v1259, 4
    %v1261 = vadd.f32 %v1259, %v1260
    %v1262 = vrot.slane %v1261, 2
    %v1263 = vadd.f32 %v1261, %v1262
    %v1264 = vrot.slane %v1263, 1
    %v1265 = vadd.f32 %v1263, %v1264
    %s1266 = vtos %v1265
    %v1267 = vmul.f32 %v1252, %v1130
    %v1268 = vmul.f32 %v1255, %v1131
    %v1269 = vmul.f32 %v1267, %v1130
    %v1270 = vmul.f32 %v1268, %v1131
    %v1271 = vsel %vm238, %v1269, 0.0
    %v1272 = vsel %vm238, %v1270, 0.0
    %v1273 = vadd.f32 %v1271, %v1272
    %1274 = vadd.xlane.f32.xlu0 %v1273
    %v1275 = vpop.xlane.xlu0 %1274
    %v1276 = vrot.slane %v1275, 4
    %v1277 = vadd.f32 %v1275, %v1276
    %v1278 = vrot.slane %v1277, 2
    %v1279 = vadd.f32 %v1277, %v1278
    %v1280 = vrot.slane %v1279, 1
    %v1281 = vadd.f32 %v1279, %v1280
    %s1282 = vtos %v1281
    %s1283 = sadd.f32 %s1282, 1e-09
    %v1284 = vstv %s1283
    %v1285 = vrcp.pop %v1284
    %v1286 = vmul.f32 %v1284, %v1285
    %v1287 = vsub.f32 1.0, %v1286
    %v1288 = vmul.f32 %v1285, %v1287
    %v1289 = vadd.f32 %v1285, %v1288
    %vm1290 = vweird.f32 %v1284
    %vm1291 = vweird.f32 %v1285
    %vm1292 = vmor %vm1290, %vm1291
    %v1293 = vsel %vm1292, %v1285, %v1289
    %v1294 = vand.u32 2147483647, %v1284
    %vm1295 = vcmp.eq.f32.partialorder %v1294, 8.507059e+37
    %v1296 = vand.u32 %v1284, 2147483648
    %v1297 = vor.u32 1.1754944e-38, %v1296
    %v1298 = vsel %vm1295, %v1297, %v1293
    %s1299 = vtos %v1298
    %s1300 = smul.f32 %s1266, %s1299
    %s1301 = ssub.f32 1.0, %s1300
    %v1302 = vmul.f32 %v1248, %v1248
    %v1303 = vsel %vm238, %v1302, 0.0
    %1304 = vadd.xlane.f32.xlu0 %v1303
    %v1305 = vpop.xlane.xlu0 %1304
    %v1306 = vrot.slane %v1305, 4
    %v1307 = vadd.f32 %v1305, %v1306
    %v1308 = vrot.slane %v1307, 2
    %v1309 = vadd.f32 %v1307, %v1308
    %v1310 = vrot.slane %v1309, 1
    %v1311 = vadd.f32 %v1309, %v1310
    %s1312 = vtos %v1311
    %s1313 = sadd.f32 %s1312, 1e-09
    %v1314 = vstv %s1313
    %v1315 = vrsqrt.pop %v1314
    %v1316 = vmul.f32 %v1315, %v1314
    %v1317 = vmul.f32 %v1316, %v1315
    %v1318 = vmul.f32 0.5, %v1317
    %v1319 = vsub.f32 1.5, %v1318
    %v1320 = vmul.f32 %v1315, %v1319
    %v1321 = vmul.f32 %v1314, %v1320
    %vm1322 = vcmp.eq.f32.partialorder %v1314, inf
    %v1323 = vsel %vm1322, %v1314, %v1321
    %vm1324 = vcmp.eq.f32.partialorder %v1314, 0.0
    %v1325 = vand.u32 %v1314, 2147483648
    %v1326 = vsel %vm1324, %v1325, %v1323
    %s1327 = vtos %v1326
    %v1328 = vstv %s1327
    %v1329 = vrcp.pop %v1328
    %v1330 = vmul.f32 %v1328, %v1329
    %v1331 = vsub.f32 1.0, %v1330
    %v1332 = vmul.f32 %v1329, %v1331
    %v1333 = vadd.f32 %v1329, %v1332
    %vm1334 = vweird.f32 %v1328
    %vm1335 = vweird.f32 %v1329
    %vm1336 = vmor %vm1334, %vm1335
    %v1337 = vsel %vm1336, %v1329, %v1333
    %v1338 = vand.u32 2147483647, %v1328
    %vm1339 = vcmp.eq.f32.partialorder %v1338, 8.507059e+37
    %v1340 = vand.u32 %v1328, 2147483648
    %v1341 = vor.u32 1.1754944e-38, %v1340
    %v1342 = vsel %vm1339, %v1341, %v1337
    %v1343 = vmul.f32 %v1248, %v1342
    %v1344 = vsub.f32 %v1343, %v513
    %v1345 = vmul.f32 %v1344, %v1344
    %v1346 = vsel %vm238, %v1345, 0.0
    %1347 = vadd.xlane.f32.xlu0 %v1346
    %v1348 = vpop.xlane.xlu0 %1347
    %v1349 = vrot.slane %v1348, 4
    %v1350 = vadd.f32 %v1348, %v1349
    %v1351 = vrot.slane %v1350, 2
    %v1352 = vadd.f32 %v1350, %v1351
    %v1353 = vrot.slane %v1352, 1
    %v1354 = vadd.f32 %v1352, %v1353
    %s1355 = vtos %v1354
    %s1356 = sadd.f32 %s1355, 1e-09
    %v1357 = vstv %s1356
    %v1358 = vrsqrt.pop %v1357
    %v1359 = vmul.f32 %v1358, %v1357
    %v1360 = vmul.f32 %v1359, %v1358
    %v1361 = vmul.f32 0.5, %v1360
    %v1362 = vsub.f32 1.5, %v1361
    %v1363 = vmul.f32 %v1358, %v1362
    %v1364 = vmul.f32 %v1357, %v1363
    %vm1365 = vcmp.eq.f32.partialorder %v1357, inf
    %v1366 = vsel %vm1365, %v1357, %v1364
    %vm1367 = vcmp.eq.f32.partialorder %v1357, 0.0
    %v1368 = vand.u32 %v1357, 2147483648
    %v1369 = vsel %vm1367, %v1368, %v1366
    %s1370 = vtos %v1369
    %v1372 = vsel %vm208, %v1185, 0
    %1374 = vmatpush.msra.mxu0 0.0
    %1375 = vmatpush.msra.mxu0 0.0
    %1376 = vmatpush.msra.mxu0 0.0
    %1377 = vmatpush.msra.mxu0 0.0
    %1378 = vmatpush.msra.mxu0 0.0
    %1379 = vmatpush.msra.mxu0 0.0
    %1380 = vmatpush.msra.mxu0 0.0
    %1381 = vmatpush.msra.mxu0 0.0
    %1382 = vmatpush.msra.mxu0 0.0
    %1383 = vmatpush.msra.mxu0 0.0
    %1384 = vmatpush.msra.mxu0 0.0
    %1385 = vmatpush.msra.mxu0 0.0
    %1386 = vmatpush.msra.mxu0 %v78
    %1387 = vmatpush.msra.mxu0 %v77
    %1388 = vmatpush.msra.mxu0 %v76
    %1389 = vmatpush.msra.mxu0 %v75
    %1390 = vmatmul.f32.gmra.mxu0 %v1372
    %v1391 = vpop.f32.mrf.mxu0
    %v1392 = vadd.f32 0.0, %v1391
    %1393 = vdwg.mxu0
    %1395 = vrot.lane.b32.xlu0 %v1392, 96
    %v1396 = vpop.permute.xlu0 %1395
    %v1399 = vsel %vm238, %v1228, 0
    %1401 = vmatpush.msra.mxu0 0.0
    %1402 = vmatpush.msra.mxu0 0.0
    %1403 = vmatpush.msra.mxu0 0.0
    %1404 = vmatpush.msra.mxu0 0.0
    %1405 = vmatpush.msra.mxu0 0.0
    %1406 = vmatpush.msra.mxu0 0.0
    %1407 = vmatpush.msra.mxu0 0.0
    %1408 = vmatpush.msra.mxu0 0.0
    %1409 = vmatpush.msra.mxu0 0.0
    %1410 = vmatpush.msra.mxu0 0.0
    %1411 = vmatpush.msra.mxu0 0.0
    %1412 = vmatpush.msra.mxu0 0.0
    %1413 = vmatpush.msra.mxu0 0.0
    %1414 = vmatpush.msra.mxu0 0.0
    %1415 = vmatpush.msra.mxu0 0.0
    %1416 = vmatpush.msra.mxu0 %v1392
    %1417 = vmatmul.f32.gmra.mxu0 %v1399
    %v1418 = vpop.f32.mrf.mxu0
    %v1419 = vadd.f32 %v1396, %v1418
    %1420 = vdwg.mxu0
    %v1421 = vadd.f32 %v1419, %v592
    %v1422 = vmax.f32 %v1421, 0.0
    %v1424 = vsel %vm208, %v1422, 0
    %1426 = vmatpush.msra.mxu0 0.0
    %1427 = vmatpush.msra.mxu0 0.0
    %1428 = vmatpush.msra.mxu0 0.0
    %1429 = vmatpush.msra.mxu0 0.0
    %1430 = vmatpush.msra.mxu0 0.0
    %1431 = vmatpush.msra.mxu0 0.0
    %1432 = vmatpush.msra.mxu0 0.0
    %1433 = vmatpush.msra.mxu0 0.0
    %1434 = vmatpush.msra.mxu0 0.0
    %1435 = vmatpush.msra.mxu0 0.0
    %1436 = vmatpush.msra.mxu0 0.0
    %1437 = vmatpush.msra.mxu0 0.0
    %1438 = vmatpush.msra.mxu0 %v83
    %1439 = vmatpush.msra.mxu0 %v82
    %1440 = vmatpush.msra.mxu0 %v81
    %1441 = vmatpush.msra.mxu0 %v80
    %1442 = vmatmul.f32.gmra.mxu0 %v1424
    %v1443 = vpop.f32.mrf.mxu0
    %v1444 = vadd.f32 %v597, %v1443
    %1445 = vdwg.mxu0
    %v1446 = vsel %vm99, %v1444, -inf
    %1447 = vmax.xlane.f32.xlu0 %v1446
    %v1448 = vpop.xlane.xlu0 %1447
    %v1449 = vsub.f32 %v1444, %v1448
    %v1450 = vmul.f32 %v1449, 1.442695
    %v1451 = vpow.pop %v1450
    %v1452 = vsel %vm99, %v1451, 0.0
    %1453 = vadd.xlane.f32.xlu0 %v1452
    %v1454 = vpop.xlane.xlu0 %1453
    %v1455 = vrcp.pop %v1454
    %v1456 = vmul.f32 %v1454, %v1455
    %v1457 = vsub.f32 1.0, %v1456
    %v1458 = vmul.f32 %v1455, %v1457
    %v1459 = vadd.f32 %v1455, %v1458
    %vm1460 = vweird.f32 %v1454
    %vm1461 = vweird.f32 %v1455
    %vm1462 = vmor %vm1460, %vm1461
    %v1463 = vsel %vm1462, %v1455, %v1459
    %v1464 = vand.u32 2147483647, %v1454
    %vm1465 = vcmp.eq.f32.partialorder %v1464, 8.507059e+37
    %v1466 = vand.u32 %v1454, 2147483648
    %v1467 = vor.u32 1.1754944e-38, %v1466
    %v1468 = vsel %vm1465, %v1467, %v1463
    %v1469 = vmul.f32 %v1451, %v1468
    %1470 = vxpose.xlu0.b32.start [1/16] %v1469, 128
    %1471 = vxpose.xlu0.b32.cont [2/16] 0.0, 128
    %1472 = vxpose.xlu0.b32.cont [3/16] 0.0, 128
    %1473 = vxpose.xlu0.b32.cont [4/16] 0.0, 128
    %1474 = vxpose.xlu0.b32.cont [5/16] 0.0, 128
    %1475 = vxpose.xlu0.b32.cont [6/16] 0.0, 128
    %1476 = vxpose.xlu0.b32.cont [7/16] 0.0, 128
    %1477 = vxpose.xlu0.b32.cont [8/16] 0.0, 128
    %1478 = vxpose.xlu0.b32.cont [9/16] 0.0, 128
    %1479 = vxpose.xlu0.b32.cont [10/16] 0.0, 128
    %1480 = vxpose.xlu0.b32.cont [11/16] 0.0, 128
    %1481 = vxpose.xlu0.b32.cont [12/16] 0.0, 128
    %1482 = vxpose.xlu0.b32.cont [13/16] 0.0, 128
    %1483 = vxpose.xlu0.b32.cont [14/16] 0.0, 128
    %1484 = vxpose.xlu0.b32.cont [15/16] 0.0, 128
    %1485 = vxpose.xlu0.b32.end [16/16] 0.0, 128
    %v1486 = vpop.trf.xlu0
    %v1487 = vpop.trf.xlu0
    %v1488 = vpop.trf.xlu0
    %v1489 = vpop.trf.xlu0
    %v1490 = vpop.trf.xlu0
    %v1491 = vpop.trf.xlu0
    %v1492 = vpop.trf.xlu0
    %v1493 = vpop.trf.xlu0
    %v1494 = vpop.trf.xlu0
    %v1495 = vpop.trf.xlu0
    %v1496 = vpop.trf.xlu0
    %v1497 = vpop.trf.xlu0
    %v1498 = vpop.trf.xlu0
    %v1499 = vpop.trf.xlu0
    %v1500 = vpop.trf.xlu0
    %v1501 = vpop.trf.xlu0
    %v1503 = vsel %vm238, %v1486, 0
    %1505 = vmatpush.msra.mxu0 0.0
    %1506 = vmatpush.msra.mxu0 0.0
    %1507 = vmatpush.msra.mxu0 0.0
    %1508 = vmatpush.msra.mxu0 0.0
    %1509 = vmatpush.msra.mxu0 0.0
    %1510 = vmatpush.msra.mxu0 0.0
    %1511 = vmatpush.msra.mxu0 0.0
    %1512 = vmatpush.msra.mxu0 0.0
    %1513 = vmatpush.msra.mxu0 0.0
    %1514 = vmatpush.msra.mxu0 0.0
    %1515 = vmatpush.msra.mxu0 0.0
    %1516 = vmatpush.msra.mxu0 0.0
    %1517 = vmatpush.msra.mxu0 0.0
    %1518 = vmatpush.msra.mxu0 0.0
    %1519 = vmatpush.msra.mxu0 0.0
    %1520 = vmatpush.msra.mxu0 %v1422
    %1521 = vmatmul.f32.gmra.mxu0 %v1503
    %v1522 = vpop.f32.mrf.mxu0
    %v1523 = vadd.f32 0.0, %v1522
    %1524 = vdwg.mxu0
    %1525 = vmatpush.msra.mxu0 0.0
    %1526 = vmatpush.msra.mxu0 0.0
    %1527 = vmatpush.msra.mxu0 0.0
    %1528 = vmatpush.msra.mxu0 0.0
    %1529 = vmatpush.msra.mxu0 0.0
    %1530 = vmatpush.msra.mxu0 0.0
    %1531 = vmatpush.msra.mxu0 0.0
    %1532 = vmatpush.msra.mxu0 0.0
    %1533 = vmatpush.msra.mxu0 0.0
    %1534 = vmatpush.msra.mxu0 0.0
    %1535 = vmatpush.msra.mxu0 0.0
    %1536 = vmatpush.msra.mxu0 0.0
    %1537 = vmatpush.msra.mxu0 0.0
    %1538 = vmatpush.msra.mxu0 0.0
    %1539 = vmatpush.msra.mxu0 0.0
    %1540 = vmatpush.msra.mxu0 %v1228
    %1541 = vmatmul.f32.gmra.mxu0 %v1503
    %v1542 = vpop.f32.mrf.mxu0
    %v1543 = vadd.f32 0.0, %v1542
    %1544 = vdwg.mxu0
    %v1546 = vsel %vm238, %v1543, 0
    %1548 = vmatpush.msra.mxu0 0.0
    %1549 = vmatpush.msra.mxu0 0.0
    %1550 = vmatpush.msra.mxu0 0.0
    %1551 = vmatpush.msra.mxu0 0.0
    %1552 = vmatpush.msra.mxu0 0.0
    %1553 = vmatpush.msra.mxu0 0.0
    %1554 = vmatpush.msra.mxu0 0.0
    %1555 = vmatpush.msra.mxu0 0.0
    %1556 = vmatpush.msra.mxu0 0.0
    %1557 = vmatpush.msra.mxu0 0.0
    %1558 = vmatpush.msra.mxu0 0.0
    %1559 = vmatpush.msra.mxu0 0.0
    %1560 = vmatpush.msra.mxu0 0.0
    %1561 = vmatpush.msra.mxu0 0.0
    %1562 = vmatpush.msra.mxu0 0.0
    %1563 = vmatpush.msra.mxu0 %v1469
    %1564 = vmatmul.f32.gmra.mxu0 %v1546
    %v1565 = vpop.f32.mrf.mxu0
    %v1566 = vadd.f32 0.0, %v1565
    %1567 = vdwg.mxu0
    %1568 = vmatpush.msra.mxu0 0.0
    %1569 = vmatpush.msra.mxu0 0.0
    %1570 = vmatpush.msra.mxu0 0.0
    %1571 = vmatpush.msra.mxu0 0.0
    %1572 = vmatpush.msra.mxu0 0.0
    %1573 = vmatpush.msra.mxu0 0.0
    %1574 = vmatpush.msra.mxu0 0.0
    %1575 = vmatpush.msra.mxu0 0.0
    %1576 = vmatpush.msra.mxu0 0.0
    %1577 = vmatpush.msra.mxu0 0.0
    %1578 = vmatpush.msra.mxu0 0.0
    %1579 = vmatpush.msra.mxu0 0.0
    %1580 = vmatpush.msra.mxu0 0.0
    %1581 = vmatpush.msra.mxu0 0.0
    %1582 = vmatpush.msra.mxu0 0.0
    %1583 = vmatpush.msra.mxu0 %v1469
    %1584 = vmatmul.f32.gmra.mxu0 %v1503
    %v1585 = vpop.f32.mrf.mxu0
    %v1586 = vadd.f32 0.0, %v1585
    %1587 = vdwg.mxu0
    %v1588 = vsel %vm238, %v1228, 0.0
    %1589 = vadd.xlane.f32.xlu0 %v1588
    %v1590 = vpop.xlane.xlu0 %1589
    %v1591 = vmul.f32 %v1566, %v411
    %v1592 = vsel %vm768, %v1591, 0.0
    %1593 = vadd.xlane.f32.xlu0 %v1592
    %v1594 = vpop.xlane.xlu0 %1593
    %v1595 = vrot.slane %v1594, 4
    %v1596 = vadd.f32 %v1594, %v1595
    %v1597 = vrot.slane %v1596, 2
    %v1598 = vadd.f32 %v1596, %v1597
    %v1599 = vrot.slane %v1598, 1
    %v1600 = vadd.f32 %v1598, %v1599
    %s1601 = vtos %v1600
    %v1602 = vmul.f32 %v1590, %v1469
    %v1603 = vmul.f32 %v1602, %v1469
    %v1604 = vsel %vm99, %v1603, 0.0
    %1605 = vadd.xlane.f32.xlu0 %v1604
    %v1606 = vpop.xlane.xlu0 %1605
    %v1607 = vrot.slane %v1606, 4
    %v1608 = vadd.f32 %v1606, %v1607
    %v1609 = vrot.slane %v1608, 2
    %v1610 = vadd.f32 %v1608, %v1609
    %v1611 = vrot.slane %v1610, 1
    %v1612 = vadd.f32 %v1610, %v1611
    %s1613 = vtos %v1612
    %s1614 = sadd.f32 %s1613, 1e-09
    %v1615 = vstv %s1614
    %v1616 = vrcp.pop %v1615
    %v1617 = vmul.f32 %v1615, %v1616
    %v1618 = vsub.f32 1.0, %v1617
    %v1619 = vmul.f32 %v1616, %v1618
    %v1620 = vadd.f32 %v1616, %v1619
    %vm1621 = vweird.f32 %v1615
    %vm1622 = vweird.f32 %v1616
    %vm1623 = vmor %vm1621, %vm1622
    %v1624 = vsel %vm1623, %v1616, %v1620
    %v1625 = vand.u32 2147483647, %v1615
    %vm1626 = vcmp.eq.f32.partialorder %v1625, 8.507059e+37
    %v1627 = vand.u32 %v1615, 2147483648
    %v1628 = vor.u32 1.1754944e-38, %v1627
    %v1629 = vsel %vm1626, %v1628, %v1624
    %s1630 = vtos %v1629
    %s1631 = smul.f32 %s1601, %s1630
    %s1632 = ssub.f32 1.0, %s1631
    %v1633 = vmul.f32 %v1586, %v1586
    %v1634 = vsel %vm768, %v1633, 0.0
    %1635 = vadd.xlane.f32.xlu0 %v1634
    %v1636 = vpop.xlane.xlu0 %1635
    %v1637 = vrot.slane %v1636, 4
    %v1638 = vadd.f32 %v1636, %v1637
    %v1639 = vrot.slane %v1638, 2
    %v1640 = vadd.f32 %v1638, %v1639
    %v1641 = vrot.slane %v1640, 1
    %v1642 = vadd.f32 %v1640, %v1641
    %s1643 = vtos %v1642
    %s1644 = sadd.f32 %s1643, 1e-09
    %v1645 = vstv %s1644
    %v1646 = vrsqrt.pop %v1645
    %v1647 = vmul.f32 %v1646, %v1645
    %v1648 = vmul.f32 %v1647, %v1646
    %v1649 = vmul.f32 0.5, %v1648
    %v1650 = vsub.f32 1.5, %v1649
    %v1651 = vmul.f32 %v1646, %v1650
    %v1652 = vmul.f32 %v1645, %v1651
    %vm1653 = vcmp.eq.f32.partialorder %v1645, inf
    %v1654 = vsel %vm1653, %v1645, %v1652
    %vm1655 = vcmp.eq.f32.partialorder %v1645, 0.0
    %v1656 = vand.u32 %v1645, 2147483648
    %v1657 = vsel %vm1655, %v1656, %v1654
    %s1658 = vtos %v1657
    %v1659 = vstv %s1658
    %v1660 = vrcp.pop %v1659
    %v1661 = vmul.f32 %v1659, %v1660
    %v1662 = vsub.f32 1.0, %v1661
    %v1663 = vmul.f32 %v1660, %v1662
    %v1664 = vadd.f32 %v1660, %v1663
    %vm1665 = vweird.f32 %v1659
    %vm1666 = vweird.f32 %v1660
    %vm1667 = vmor %vm1665, %vm1666
    %v1668 = vsel %vm1667, %v1660, %v1664
    %v1669 = vand.u32 2147483647, %v1659
    %vm1670 = vcmp.eq.f32.partialorder %v1669, 8.507059e+37
    %v1671 = vand.u32 %v1659, 2147483648
    %v1672 = vor.u32 1.1754944e-38, %v1671
    %v1673 = vsel %vm1670, %v1672, %v1668
    %v1674 = vmul.f32 %v1586, %v1673
    %v1675 = vsub.f32 %v1674, %v859
    %v1676 = vmul.f32 %v1675, %v1675
    %v1677 = vsel %vm768, %v1676, 0.0
    %1678 = vadd.xlane.f32.xlu0 %v1677
    %v1679 = vpop.xlane.xlu0 %1678
    %v1680 = vrot.slane %v1679, 4
    %v1681 = vadd.f32 %v1679, %v1680
    %v1682 = vrot.slane %v1681, 2
    %v1683 = vadd.f32 %v1681, %v1682
    %v1684 = vrot.slane %v1683, 1
    %v1685 = vadd.f32 %v1683, %v1684
    %s1686 = vtos %v1685
    %s1687 = sadd.f32 %s1686, 1e-09
    %v1688 = vstv %s1687
    %v1689 = vrsqrt.pop %v1688
    %v1690 = vmul.f32 %v1689, %v1688
    %v1691 = vmul.f32 %v1690, %v1689
    %v1692 = vmul.f32 0.5, %v1691
    %v1693 = vsub.f32 1.5, %v1692
    %v1694 = vmul.f32 %v1689, %v1693
    %v1695 = vmul.f32 %v1688, %v1694
    %vm1696 = vcmp.eq.f32.partialorder %v1688, inf
    %v1697 = vsel %vm1696, %v1688, %v1695
    %vm1698 = vcmp.eq.f32.partialorder %v1688, 0.0
    %v1699 = vand.u32 %v1688, 2147483648
    %v1700 = vsel %vm1698, %v1699, %v1697
    %s1701 = vtos %v1700
    %v1703 = vsel %vm208, %v1523, 0
    %1705 = vmatpush.msra.mxu0 0.0
    %1706 = vmatpush.msra.mxu0 0.0
    %1707 = vmatpush.msra.mxu0 0.0
    %1708 = vmatpush.msra.mxu0 0.0
    %1709 = vmatpush.msra.mxu0 0.0
    %1710 = vmatpush.msra.mxu0 0.0
    %1711 = vmatpush.msra.mxu0 0.0
    %1712 = vmatpush.msra.mxu0 0.0
    %1713 = vmatpush.msra.mxu0 0.0
    %1714 = vmatpush.msra.mxu0 0.0
    %1715 = vmatpush.msra.mxu0 0.0
    %1716 = vmatpush.msra.mxu0 0.0
    %1717 = vmatpush.msra.mxu0 %v88
    %1718 = vmatpush.msra.mxu0 %v87
    %1719 = vmatpush.msra.mxu0 %v86
    %1720 = vmatpush.msra.mxu0 %v85
    %1721 = vmatmul.f32.gmra.mxu0 %v1703
    %v1722 = vpop.f32.mrf.mxu0
    %v1723 = vadd.f32 0.0, %v1722
    %1724 = vdwg.mxu0
    %1726 = vrot.lane.b32.xlu0 %v1723, 96
    %v1727 = vpop.permute.xlu0 %1726
    %v1730 = vsel %vm99, %v1566, 0
    %v1732 = vsel %vm112, %v1723, 0
    %1734 = vmatpush.msra.mxu0 0.0
    %1735 = vmatpush.msra.mxu0 0.0
    %1736 = vmatpush.msra.mxu0 0.0
    %1737 = vmatpush.msra.mxu0 0.0
    %1738 = vmatpush.msra.mxu0 0.0
    %1739 = vmatpush.msra.mxu0 0.0
    %1740 = vmatpush.msra.mxu0 0.0
    %1741 = vmatpush.msra.mxu0 0.0
    %1742 = vmatpush.msra.mxu0 0.0
    %1743 = vmatpush.msra.mxu0 0.0
    %1744 = vmatpush.msra.mxu0 0.0
    %1745 = vmatpush.msra.mxu0 0.0
    %1746 = vmatpush.msra.mxu0 0.0
    %1747 = vmatpush.msra.mxu0 0.0
    %1748 = vmatpush.msra.mxu0 0.0
    %1749 = vmatpush.msra.mxu0 %v1732
    %1750 = vmatmul.f32.gmra.mxu0 %v1730
    %v1751 = vpop.f32.mrf.mxu0
    %v1752 = vadd.f32 %v1727, %v1751
    %1753 = vdwg.mxu0
    %v1754 = vadd.f32 %v1752, %v940
    %v1755 = vmax.f32 %v1754, 0.0
    %v1757 = vsel %vm112, %v1755, 0
    %1759 = vmatpush.msra.mxu0 0.0
    %1760 = vmatpush.msra.mxu0 0.0
    %1761 = vmatpush.msra.mxu0 0.0
    %1762 = vmatpush.msra.mxu0 0.0
    %1763 = vmatpush.msra.mxu0 0.0
    %1764 = vmatpush.msra.mxu0 0.0
    %1765 = vmatpush.msra.mxu0 0.0
    %1766 = vmatpush.msra.mxu0 0.0
    %1767 = vmatpush.msra.mxu0 0.0
    %1768 = vmatpush.msra.mxu0 0.0
    %1769 = vmatpush.msra.mxu0 0.0
    %1770 = vmatpush.msra.mxu0 0.0
    %1771 = vmatpush.msra.mxu0 0.0
    %1772 = vmatpush.msra.mxu0 0.0
    %1773 = vmatpush.msra.mxu0 0.0
    %1774 = vmatpush.msra.mxu0 %v1757
    %1775 = vmatmul.f32.gmra.mxu0 %v945
    %v1776 = vpop.f32.mrf.mxu0
    %v1777 = vadd.f32 0.0, %v1776
    %1778 = vdwg.mxu0
    %v1780 = vsel %vm208, %v1777, 0
    %1782 = vmatpush.msra.mxu0 0.0
    %1783 = vmatpush.msra.mxu0 0.0
    %1784 = vmatpush.msra.mxu0 0.0
    %1785 = vmatpush.msra.mxu0 0.0
    %1786 = vmatpush.msra.mxu0 0.0
    %1787 = vmatpush.msra.mxu0 0.0
    %1788 = vmatpush.msra.mxu0 0.0
    %1789 = vmatpush.msra.mxu0 0.0
    %1790 = vmatpush.msra.mxu0 0.0
    %1791 = vmatpush.msra.mxu0 0.0
    %1792 = vmatpush.msra.mxu0 0.0
    %1793 = vmatpush.msra.mxu0 0.0
    %1794 = vmatpush.msra.mxu0 %v93
    %1795 = vmatpush.msra.mxu0 %v92
    %1796 = vmatpush.msra.mxu0 %v91
    %1797 = vmatpush.msra.mxu0 %v90
    %1798 = vmatmul.f32.gmra.mxu0 %v1780
    %v1799 = vpop.f32.mrf.mxu0
    %v1800 = vadd.f32 %v94, %v1799
    %1801 = vdwg.mxu0
    %1802 = vst.msk [vmem:[#allocation5 + $0x1] sm:$0x1] %vm993, %v1800
    %s1803 = sadd.f32 %s996, %s1301
    %s1804 = sadd.f32 %s1803, %s1632
    %s1805 = sadd.f32 %s998, %s1370
    %s1806 = sadd.f32 %s1805, %s1701
    %s1807 = smul.f32 %s1804, 0.5
    %v1808 = vstv %s1807
    %vm1809 = vcmask 0
    %1810 = vst.msk [vmem:[#allocation6] sm:$0x1] %vm1809, %v1808
    %s1811 = smul.f32 %s1806, 0.5
    %v1812 = vstv %s1811
    %1813 = vst.msk [vmem:[#allocation8] sm:$0x1] %vm1809, %v1812
    // Predicated region
    $region66: #{classification_forward.1} parent=1 // pred_check
      _
    $region67: #{classification_forward.1} parent=1 // pred_check_branch
      %1815 = sbr.rel (0) target = $region69
    $region68: #{classification_forward.1} parent=1 // pred_region
      %1817 = vsyncadd [#allocation3], 0
      %s1819 = sshll.u32 [#allocation5], 4
      %s1820 = int_to_ptr.vmem [resolvable:$true] %s1819
      %s1821 = sshll.u32 %s15, 4
      %s1822 = int_to_ptr.hbm [resolvable:$true] %s1821
      %1824 = dma.vmem_to_hbm [thread:$0]  %s1820, 32, %s1822, [#allocation3]
    $region69: #{classification_forward.1} parent=1 // pred_fallthru
      _
    // Predicated region
    $region70: #{classification_forward.1} parent=1 // pred_check
      _
    $region71: #{classification_forward.1} parent=1 // pred_check_branch
      %1826 = sbr.rel (0) target = $region73
    $region72: #{classification_forward.1} parent=1 // pred_region
      %1828 = vsyncadd [#allocation7], 0
      %s1830 = sshll.u32 [#allocation6], 4
      %s1831 = int_to_ptr.vmem [resolvable:$true] %s1830
      %s1832 = sshll.u32 %s16, 4
      %s1833 = int_to_ptr.hbm [resolvable:$true] %s1832
      %1835 = dma.vmem_to_hbm [thread:$0]  %s1831, 16, %s1833, [#allocation7]
    $region73: #{classification_forward.1} parent=1 // pred_fallthru
      _
    // Predicated region
    $region74: #{classification_forward.1} parent=1 // pred_check
      _
    $region75: #{classification_forward.1} parent=1 // pred_check_branch
      %1837 = sbr.rel (0) target = $region77
    $region76: #{classification_forward.1} parent=1 // pred_region
      %1839 = vsyncadd [#allocation7], 0
      %s1841 = sshll.u32 [#allocation8], 4
      %s1842 = int_to_ptr.vmem [resolvable:$true] %s1841
      %s1843 = sshll.u32 %s17, 4
      %s1844 = int_to_ptr.hbm [resolvable:$true] %s1843
      %1846 = dma.vmem_to_hbm [thread:$0]  %s1842, 16, %s1844, [#allocation7]
    $region77: #{classification_forward.1} parent=1 // pred_fallthru
      _
    // Predicated region
    $region78: #{classification_forward.1} parent=1 // pred_check
      _
    $region79: #{classification_forward.1} parent=1 // pred_check_branch
      %1848 = sbr.rel (0) target = $region81
    $region80: #{classification_forward.1} parent=1 // pred_region
      %1850 = dma.done [#allocation3], 32
    $region81: #{classification_forward.1} parent=1 // pred_fallthru
      _
    // Predicated region
    $region82: #{classification_forward.1} parent=1 // pred_check
      _
    $region83: #{classification_forward.1} parent=1 // pred_check_branch
      %1852 = sbr.rel (0) target = $region85
    $region84: #{classification_forward.1} parent=1 // pred_region
      %1854 = dma.done [#allocation7], 16
    $region85: #{classification_forward.1} parent=1 // pred_fallthru
      _
    // Predicated region
    $region86: #{classification_forward.1} parent=1 // pred_check
      _
    $region87: #{classification_forward.1} parent=1 // pred_check_branch
      %1856 = sbr.rel (0) target = $region89
    $region88: #{classification_forward.1} parent=1 // pred_region
      %1858 = dma.done [#allocation7], 16
    $region89: #{classification_forward.1} parent=1 // pred_fallthru
      _
    %1859 = vsyncpa [#allocation3], 1
    %1860 = vsyncpa [#allocation7], 1
    %1861 = vsyncpa [#allocation4], 1

</llo_original>
